<compile_context>
chip_gen: v7x
topology: tpu7x:2x2x1
jax: 0.10.0
libtpu: 0.0.40
codegen_flags: <defaults>
</compile_context>

<pallas_src>
import jax
import jax.numpy as jnp
from jax.experimental import pallas as pl
from jax.experimental.pallas import tpu as pltpu

# ---- module hyper-parameters (mirroring the PyTorch source) -----------------
EXPONENT = 1
NETWORK_DEPTH = 3
OUTPUT_TENSOR_LENGTH = 7
SINGLE_POSE_DATA_LENGTH = 34   # stand-in for len(trainPoseData[0]) (synthetic)

LANE = 128                     # TPU lane width


def _round_up(n, m):
    return (n + m - 1) // m * m


def layer_sizes():
    interval_list = [i ** EXPONENT / NETWORK_DEPTH ** EXPONENT
                     for i in range(0, NETWORK_DEPTH + 1)]
    interval_list.reverse()
    delta = SINGLE_POSE_DATA_LENGTH - OUTPUT_TENSOR_LENGTH
    return [int(delta * p + OUTPUT_TENSOR_LENGTH) for p in interval_list]


# ---- Pallas kernel: full 3-layer MLP hot path --------------------------------
def _mxu_dot(a, w_ref):
    """MXU matmul with f32 accumulation.

    bf16 weights: cast `a` to bf16 (VPU op, hidden under the HBM stream) and use
    the bf16 MXU path.  f32 weights: Precision.HIGHEST for a bit-exact check.
    """
    w = w_ref[...]
    prec = (jax.lax.Precision.HIGHEST if w.dtype == jnp.float32
            else jax.lax.Precision.DEFAULT)
    return jnp.dot(a.astype(w.dtype), w,
                   preferred_element_type=jnp.float32, precision=prec)


def mlp_kernel(x_ref, w1_ref, b1_ref, w2_ref, b2_ref, w3_ref, b3_ref, o_ref):
    # layer 1: Linear + ReLU (f32 accumulation, f32 epilogue)
    h = jnp.maximum(_mxu_dot(x_ref[...], w1_ref) + b1_ref[...], 0.0)
    # layer 2: Linear + ReLU
    h = jnp.maximum(_mxu_dot(h, w2_ref) + b2_ref[...], 0.0)
    # last layer: Linear (no activation); narrow (tb, 7) f32 store -> tiny writeback
    o_ref[...] = (_mxu_dot(h, w3_ref) + b3_ref[...]).astype(o_ref.dtype)


# ---- parameter padding: hidden widths lane-dense, final width untouched ------
def pad_params(params, compute_dtype=jnp.bfloat16):
    """Zero-pad each *hidden* layer's out-dim (and matching next in-dim) to 128.

    The last layer's out-dim is left at 7 so the HBM writeback stays minimal.
    Weights are cast to compute_dtype (bf16 default, f32 for exact checks);
    biases stay f32 because the bias-add / ReLU epilogue runs in f32 on the VPU.
    Zero padding is exact: padded lanes stay 0 through ReLU and contribute 0
    downstream, so the unpadded math is reproduced exactly (in f32).
    """
    padded = []
    prev_pad = 0
    n_layers = len(params)
    for li, (w, b) in enumerate(params):
        d_in, d_out = w.shape
        d_in_p = d_in + prev_pad
        d_out_p = d_out if li == n_layers - 1 else _round_up(d_out, LANE)
        w_p = jnp.zeros((d_in_p, d_out_p), compute_dtype)
        w_p = w_p.at[:d_in, :d_out].set(w.astype(compute_dtype))
        b_p = jnp.zeros((1, d_out_p), jnp.float32)
        b_p = b_p.at[:, :d_out].set(b.astype(jnp.float32))
        padded.append((w_p, b_p))
        prev_pad = d_out_p - d_out
    return padded


# ---- wrapper: cdiv grid over batch, weights resident, minimal writeback ------
def net_forward(x, padded_params, *, tile_b=8192,
                vmem_limit_bytes=32 * 1024 * 1024):
    (w1, b1), (w2, b2), (w3, b3) = padded_params
    B, D = x.shape
    d_out = w3.shape[1]            # 7: true output width, no padding

    # Batch tile: multiple of 16 (bf16 sublane packing), capped near the batch
    # so small batches don't allocate an oversized tile.  tb=8192 keeps the
    # double-buffered x+out tiles at ~2.7 MiB -- safe on v7x's 64 MiB VMEM.
    tb = _round_up(min(tile_b, _round_up(B, 16)), 16)
    grid = (pl.cdiv(B, tb),)       # ragged last tile: padded reads, masked writes

    # Advisory cost estimate for the XLA scheduler.
    w_item = jnp.dtype(w1.dtype).itemsize
    flops = 2 * B * (D * w1.shape[1]
                     + w2.shape[0] * w2.shape[1]
                     + w3.shape[0] * w3.shape[1])
    bytes_accessed = (B * D * x.dtype.itemsize              # x stream (f32, no copy)
                      + B * d_out * 4                       # narrow output writeback
                      + sum(w.size * w_item + b.size * 4
                            for w, b in padded_params))     # resident params
    cost = pl.CostEstimate(flops=flops, transcendentals=0,
                           bytes_accessed=bytes_accessed)

    def full_spec(shape):
        # Constant block index -> block stays VMEM-resident across the grid.
        return pl.BlockSpec(shape, lambda i: (0, 0))

    out = pl.pallas_call(
        mlp_kernel,
        out_shape=jax.ShapeDtypeStruct((B, d_out), jnp.float32),
        grid=grid,
        in_specs=[
            pl.BlockSpec((tb, D), lambda i: (i, 0)),   # x: tiled over batch
            full_spec(w1.shape), full_spec(b1.shape),  # weights/biases: resident
            full_spec(w2.shape), full_spec(b2.shape),
            full_spec(w3.shape), full_spec(b3.shape),
        ],
        out_specs=pl.BlockSpec((tb, d_out), lambda i: (i, 0)),
        compiler_params=pltpu.CompilerParams(
            # On v7x, verify via xprof that this shards across both TCs; if one
            # TC idles, switch to pltpu.CORE_PARALLEL / an explicit core split.
            dimension_semantics=("parallel",),
            vmem_limit_bytes=vmem_limit_bytes),
        cost_estimate=cost,
    )(x, w1, b1, w2, b2, w3, b3)

    return out  # already (B, 7): no wrapper-side slice / extra HBM pass


# ---- deterministic parameter init (torch.nn.Linear-style uniform) -----------
def init_params(key):
    sizes = layer_sizes()  # e.g. [34, 25, 16, 7]
    params = []
    for i in range(len(sizes) - 1):
        d_in, d_out = sizes[i], sizes[i + 1]
        key, kw, kb = jax.random.split(key, 3)
        bound = 1.0 / jnp.sqrt(jnp.float32(d_in))
        # stored as (in, out) so the kernel does x @ W (== x @ W_torch.T)
        w = jax.random.uniform(kw, (d_in, d_out), jnp.float32, -bound, bound)
        b = jax.random.uniform(kb, (1, d_out), jnp.float32, -bound, bound)
        params.append((w, b))
    return params


def reference_forward(x, params):
    (w1, b1), (w2, b2), (w3, b3) = params
    h = jnp.maximum(x @ w1 + b1, 0.0)
    h = jnp.maximum(h @ w2 + b2, 0.0)
    return h @ w3 + b3


if __name__ == "__main__":
    key = jax.random.PRNGKey(0)
    key, kx, kx2 = jax.random.split(key, 3)

    sizes = layer_sizes()          # [34, 25, 16, 7]
    params = init_params(key)

    batch = 10
    x = jax.random.normal(kx, (batch, sizes[0]), jnp.float32)
    ref = reference_forward(x, params)

    # --- f32 weights (Precision.HIGHEST in-kernel): tight correctness check --
    pp32 = pad_params(params, jnp.float32)
    out32 = jax.block_until_ready(net_forward(x, pp32))
    assert out32.shape == (batch, OUTPUT_TENSOR_LENGTH), out32.shape
    assert jnp.allclose(out32, ref, atol=1e-5, rtol=1e-5), "f32 mismatch vs reference"

    # --- bf16 weights (default production path), x streamed as f32 -----------
    pp16 = pad_params(params, jnp.bfloat16)
    out16 = jax.block_until_ready(net_forward(x, pp16))
    assert out16.shape == (batch, OUTPUT_TENSOR_LENGTH), out16.shape
    assert jnp.allclose(out16, ref, atol=1e-1, rtol=1e-1), "bf16 mismatch"

    # --- multi-step grid with a ragged last tile (40 rows, tile 16 -> grid 3) -
    batch2 = 40
    x2 = jax.random.normal(kx2, (batch2, sizes[0]), jnp.float32)
    out2 = jax.block_until_ready(net_forward(x2, pp16, tile_b=16))
    ref2 = reference_forward(x2, params)
    assert out2.shape == (batch2, OUTPUT_TENSOR_LENGTH), out2.shape
    assert jnp.allclose(out2, ref2, atol=1e-1, rtol=1e-1), "tiled bf16 mismatch"

    print("KERNEL_OK")
</pallas_src>

<mosaic_0001>
module attributes {stable_mosaic.version = 11 : i64} {
  func.func @mlp_kernel(%arg0: i32, %arg1: memref<16x34xf32, #tpu.memory_space<vmem>>, %arg2: memref<34x128xf32, #tpu.memory_space<vmem>>, %arg3: memref<1x128xf32, #tpu.memory_space<vmem>>, %arg4: memref<128x128xf32, #tpu.memory_space<vmem>>, %arg5: memref<1x128xf32, #tpu.memory_space<vmem>>, %arg6: memref<128x7xf32, #tpu.memory_space<vmem>>, %arg7: memref<1x7xf32, #tpu.memory_space<vmem>>, %arg8: memref<16x7xf32, #tpu.memory_space<vmem>>) attributes {dimension_semantics = [#tpu.dimension_semantics<parallel>], iteration_bounds = array<i64: 1>, scalar_prefetch = 0 : i64, scratch_operands = 0 : i64, tpu.core_type = #tpu.core_type<tc>, window_params = [{transform_indices = @transform_0, window_bounds = array<i64: 16, 34>}, {pipeline_mode = #tpu.pipeline_mode<synchronous>, transform_indices = @transform_1, window_bounds = array<i64: 34, 128>}, {pipeline_mode = #tpu.pipeline_mode<synchronous>, transform_indices = @transform_2, window_bounds = array<i64: 1, 128>}, {pipeline_mode = #tpu.pipeline_mode<synchronous>, transform_indices = @transform_3, window_bounds = array<i64: 128, 128>}, {pipeline_mode = #tpu.pipeline_mode<synchronous>, transform_indices = @transform_4, window_bounds = array<i64: 1, 128>}, {pipeline_mode = #tpu.pipeline_mode<synchronous>, transform_indices = @transform_5, window_bounds = array<i64: 128, 7>}, {pipeline_mode = #tpu.pipeline_mode<synchronous>, transform_indices = @transform_6, window_bounds = array<i64: 1, 7>}, {transform_indices = @transform_7, window_bounds = array<i64: 16, 7>}]} {
    %c0 = arith.constant 0 : index
    %c0_0 = arith.constant 0 : index
    %0 = vector.load %arg1[%c0, %c0_0] : memref<16x34xf32, #tpu.memory_space<vmem>>, vector<16x34xf32>
    %c0_1 = arith.constant 0 : index
    %c0_2 = arith.constant 0 : index
    %1 = vector.load %arg2[%c0_1, %c0_2] : memref<34x128xf32, #tpu.memory_space<vmem>>, vector<34x128xf32>
    %cst = arith.constant dense<0.000000e+00> : vector<16x128xf32>
    %2 = tpu.matmul %0, %1, %cst {dimension_numbers = #tpu.dot_dimension_numbers<[1], [0], [0], [1], [0, 0, 1, 1], [], []>, precision = #tpu.contract_precision<fp32>} : vector<16x34xf32>, vector<34x128xf32>, vector<16x128xf32> -> vector<16x128xf32>
    %c0_3 = arith.constant 0 : index
    %c0_4 = arith.constant 0 : index
    %3 = vector.load %arg3[%c0_3, %c0_4] : memref<1x128xf32, #tpu.memory_space<vmem>>, vector<1x128xf32>
    %4 = vector.broadcast %3 : vector<1x128xf32> to vector<16x128xf32>
    %5 = arith.addf %2, %4 : vector<16x128xf32>
    %cst_5 = arith.constant 0.000000e+00 : f32
    %6 = vector.broadcast %cst_5 : f32 to vector<16x128xf32>
    %7 = arith.maximumf %5, %6 : vector<16x128xf32>
    %c0_6 = arith.constant 0 : index
    %c0_7 = arith.constant 0 : index
    %8 = vector.load %arg4[%c0_6, %c0_7] : memref<128x128xf32, #tpu.memory_space<vmem>>, vector<128x128xf32>
    %cst_8 = arith.constant dense<0.000000e+00> : vector<16x128xf32>
    %9 = tpu.matmul %7, %8, %cst_8 {dimension_numbers = #tpu.dot_dimension_numbers<[1], [0], [0], [1], [0, 0, 1, 1], [], []>, precision = #tpu.contract_precision<fp32>} : vector<16x128xf32>, vector<128x128xf32>, vector<16x128xf32> -> vector<16x128xf32>
    %c0_9 = arith.constant 0 : index
    %c0_10 = arith.constant 0 : index
    %10 = vector.load %arg5[%c0_9, %c0_10] : memref<1x128xf32, #tpu.memory_space<vmem>>, vector<1x128xf32>
    %11 = vector.broadcast %10 : vector<1x128xf32> to vector<16x128xf32>
    %12 = arith.addf %9, %11 : vector<16x128xf32>
    %cst_11 = arith.constant 0.000000e+00 : f32
    %13 = vector.broadcast %cst_11 : f32 to vector<16x128xf32>
    %14 = arith.maximumf %12, %13 : vector<16x128xf32>
    %c0_12 = arith.constant 0 : index
    %c0_13 = arith.constant 0 : index
    %15 = vector.load %arg6[%c0_12, %c0_13] : memref<128x7xf32, #tpu.memory_space<vmem>>, vector<128x7xf32>
    %cst_14 = arith.constant dense<0.000000e+00> : vector<16x7xf32>
    %16 = tpu.matmul %14, %15, %cst_14 {dimension_numbers = #tpu.dot_dimension_numbers<[1], [0], [0], [1], [0, 0, 1, 1], [], []>, precision = #tpu.contract_precision<fp32>} : vector<16x128xf32>, vector<128x7xf32>, vector<16x7xf32> -> vector<16x7xf32>
    %c0_15 = arith.constant 0 : index
    %c0_16 = arith.constant 0 : index
    %17 = vector.load %arg7[%c0_15, %c0_16] : memref<1x7xf32, #tpu.memory_space<vmem>>, vector<1x7xf32>
    %18 = vector.broadcast %17 : vector<1x7xf32> to vector<16x7xf32>
    %19 = arith.addf %16, %18 : vector<16x7xf32>
    %c0_17 = arith.constant 0 : index
    %c0_18 = arith.constant 0 : index
    %20 = vector.load %arg8[%c0_17, %c0_18] : memref<16x7xf32, #tpu.memory_space<vmem>>, vector<16x7xf32>
    tpu.vector_store %arg8[%c0_17, %c0_18], %19 {strides = array<i32>} : memref<16x7xf32, #tpu.memory_space<vmem>>, vector<16x7xf32>,
    return
  }
  func.func @transform_0(%arg0: i32) -> (i32, i32) {
    %c0_i32 = arith.constant 0 : i32
    %c0_i32_0 = arith.constant 0 : i32
    return %arg0, %c0_i32 : i32, i32
  }
  func.func @transform_1(%arg0: i32) -> (i32, i32) {
    %c0_i32 = arith.constant 0 : i32
    %c0_i32_0 = arith.constant 0 : i32
    %c0_i32_1 = arith.constant 0 : i32
    return %c0_i32, %c0_i32_0 : i32, i32
  }
  func.func @transform_2(%arg0: i32) -> (i32, i32) {
    %c0_i32 = arith.constant 0 : i32
    %c0_i32_0 = arith.constant 0 : i32
    %c0_i32_1 = arith.constant 0 : i32
    return %c0_i32, %c0_i32_0 : i32, i32
  }
  func.func @transform_3(%arg0: i32) -> (i32, i32) {
    %c0_i32 = arith.constant 0 : i32
    %c0_i32_0 = arith.constant 0 : i32
    %c0_i32_1 = arith.constant 0 : i32
    return %c0_i32, %c0_i32_0 : i32, i32
  }
  func.func @transform_4(%arg0: i32) -> (i32, i32) {
    %c0_i32 = arith.constant 0 : i32
    %c0_i32_0 = arith.constant 0 : i32
    %c0_i32_1 = arith.constant 0 : i32
    return %c0_i32, %c0_i32_0 : i32, i32
  }
  func.func @transform_5(%arg0: i32) -> (i32, i32) {
    %c0_i32 = arith.constant 0 : i32
    %c0_i32_0 = arith.constant 0 : i32
    %c0_i32_1 = arith.constant 0 : i32
    return %c0_i32, %c0_i32_0 : i32, i32
  }
  func.func @transform_6(%arg0: i32) -> (i32, i32) {
    %c0_i32 = arith.constant 0 : i32
    %c0_i32_0 = arith.constant 0 : i32
    %c0_i32_1 = arith.constant 0 : i32
    return %c0_i32, %c0_i32_0 : i32, i32
  }
  func.func @transform_7(%arg0: i32) -> (i32, i32) {
    %c0_i32 = arith.constant 0 : i32
    %c0_i32_0 = arith.constant 0 : i32
    return %arg0, %c0_i32 : i32, i32
  }
}

</mosaic_0001>

<llo_original>
// kernel: tpu_custom_call.1
$region0: #{tpu_custom_call.1}
  #allocation0 [shape = 'u32[]', space=smem, size = 0x4, offset = 0x4, fixed_abs, tag = 'smem constant byte address 0x4 - core index']
  #allocation1 [shape = 'u32[144,128]{1,0:T(1,128)}', space=vmem, size = 0x12000, scoped, tag = 'internal scratch']
  %s0 = inlined_call_operand.vmem [shape: f32[10,34], index: 0, kind: input, shape index: {}]
  %s1 = inlined_call_operand.hbm [shape: f32[34,128], index: 1, kind: input, shape index: {}]
  %s2 = inlined_call_operand.vmem [shape: f32[1,128], index: 2, kind: input, shape index: {}]
  %s3 = inlined_call_operand.vmem [shape: f32[128,128], index: 3, kind: input, shape index: {}]
  %s4 = inlined_call_operand.vmem [shape: f32[1,128], index: 4, kind: input, shape index: {}]
  %s5 = inlined_call_operand.vmem [shape: f32[128,7], index: 5, kind: input, shape index: {}]
  %s6 = inlined_call_operand.vmem [shape: f32[1,7], index: 6, kind: input, shape index: {}]
  %s7 = inlined_call_operand.vmem [shape: f32[10,7], index: 7, kind: output, shape index: {}]
  %s8 = sld [smem:[#allocation0]]
  $region42: #{tpu_custom_call.1} parent=0
    _
  %s10 = ssub.s32 1, %s8
  %s11 = scalar_select 0, %s10, %s8
  $region1: #{tpu_custom_call.1} parent=0
    #allocation2 [shape = 'u8[20480]{0}', space=vmem, size = 0x5000, scoped, tag = 'input window, operand 1, single buffered']
    #allocation3 [shape = 's32[1]{0}', space=sflag, size = 0x4, scoped, tag = 'scoped memory for tpu_custom_call.1']
    %12 = vsyncpa [#allocation3], 0
    // Predicated region
    $region2: #{tpu_custom_call.1} parent=1 // pred_check
      _
    $region3: #{tpu_custom_call.1} parent=1 // pred_check_branch
      %14 = sbr.rel (0) target = $region5
    $region4: #{tpu_custom_call.1} parent=1 // pred_region
      _
    $region5: #{tpu_custom_call.1} parent=1 // pred_fallthru
      _
    // Predicated region
    $region6: #{tpu_custom_call.1} parent=1 // pred_check
      _
    $region7: #{tpu_custom_call.1} parent=1 // pred_check_branch
      %16 = sbr.rel (0) target = $region9
    $region8: #{tpu_custom_call.1} parent=1 // pred_region
      %s18 = ssub.s32 640, 640
      %19 = vsyncadd [#allocation3], %s18
      %s20 = sshll.u32 [#allocation2], 4
      %s21 = int_to_ptr.vmem [resolvable:$true] %s20
      %26 = dma.hbm_to_vmem [thread:$0]  %s1, 640, %s21, [#allocation3], 128, 128, 8
    $region9: #{tpu_custom_call.1} parent=1 // pred_fallthru
      _
    // Predicated region
    $region10: #{tpu_custom_call.1} parent=1 // pred_check
      _
    $region11: #{tpu_custom_call.1} parent=1 // pred_check_branch
      %28 = sbr.rel (0) target = $region13
    $region12: #{tpu_custom_call.1} parent=1 // pred_region
      _
    $region13: #{tpu_custom_call.1} parent=1 // pred_fallthru
      _
    // Predicated region
    $region14: #{tpu_custom_call.1} parent=1 // pred_check
      _
    $region15: #{tpu_custom_call.1} parent=1 // pred_check_branch
      %30 = sbr.rel (0) target = $region17
    $region16: #{tpu_custom_call.1} parent=1 // pred_region
      _
    $region17: #{tpu_custom_call.1} parent=1 // pred_fallthru
      _
    // Predicated region
    $region18: #{tpu_custom_call.1} parent=1 // pred_check
      _
    $region19: #{tpu_custom_call.1} parent=1 // pred_check_branch
      %32 = sbr.rel (0) target = $region21
    $region20: #{tpu_custom_call.1} parent=1 // pred_region
      _
    $region21: #{tpu_custom_call.1} parent=1 // pred_fallthru
      _
    // Predicated region
    $region22: #{tpu_custom_call.1} parent=1 // pred_check
      _
    $region23: #{tpu_custom_call.1} parent=1 // pred_check_branch
      %34 = sbr.rel (0) target = $region25
    $region24: #{tpu_custom_call.1} parent=1 // pred_region
      _
    $region25: #{tpu_custom_call.1} parent=1 // pred_fallthru
      _
    // Predicated region
    $region26: #{tpu_custom_call.1} parent=1 // pred_check
      _
    $region27: #{tpu_custom_call.1} parent=1 // pred_check_branch
      %36 = sbr.rel (0) target = $region29
    $region28: #{tpu_custom_call.1} parent=1 // pred_region
      _
    $region29: #{tpu_custom_call.1} parent=1 // pred_fallthru
      _
    // Predicated region
    $region30: #{tpu_custom_call.1} parent=1 // pred_check
      _
    $region31: #{tpu_custom_call.1} parent=1 // pred_check_branch
      %38 = sbr.rel (0) target = $region33
    $region32: #{tpu_custom_call.1} parent=1 // pred_region
      %39 = dma.done [#allocation3], 640
    $region33: #{tpu_custom_call.1} parent=1 // pred_fallthru
      _
    %v40 = vld [vmem:[%s0] sm:$0xff]
    %v41 = vld [vmem:[%s0 + $0x8] sm:$0xff]
    %v42 = vld [vmem:[#allocation2] sm:$0xff]
    %v43 = vld [vmem:[#allocation2 + $0x8] sm:$0xff]
    %v44 = vld [vmem:[#allocation2 + $0x10] sm:$0xff]
    %v45 = vld [vmem:[#allocation2 + $0x18] sm:$0xff]
    %v46 = vld [vmem:[#allocation2 + $0x20] sm:$0x3]
    %v47 = vld [vmem:[%s2] sm:$0x1]
    %v49 = vlaneseq
    %v50 = vshrl.u32 %v49, 7
    %v51 = vsub.s32 0, %v50
    %v52 = vrot.slane %v47, %v51
    %vm54 = vcmask 277504
    %v56 = vsel %vm54, %v40, 0
    %v59 = vsel %vm54, %v41, 0
    %vm61 = vcmask 1041408
    %v63 = vsel %vm61, %v46, 0
    %65 = vmatprep.subr.mxu0 0.0
    %v66 = vand.u32 %v42, 4294901760
    %67 = vmatpush1.msra.mxu0 %v66
    %68 = vmatprep.subr.mxu0 0.0
    %v69 = vand.u32 %v43, 4294901760
    %70 = vmatpush1.msra.mxu0 %v69
    %71 = vmatprep.subr.mxu0 0.0
    %v72 = vand.u32 %v44, 4294901760
    %73 = vmatpush1.msra.mxu0 %v72
    %74 = vmatprep.subr.mxu0 0.0
    %v75 = vand.u32 %v45, 4294901760
    %76 = vmatpush1.msra.mxu0 %v75
    %77 = vmatprep.subr.mxu0 0.0
    %v78 = vand.u32 %v63, 4294901760
    %79 = vmatpush1.msra.mxu0 %v78
    %80 = vmatprep.subr.mxu0 0.0
    %81 = vmatpush1.msra.mxu0 0.0
    %82 = vmatprep.subr.mxu0 0.0
    %83 = vmatpush1.msra.mxu0 0.0
    %84 = vmatprep.subr.mxu0 0.0
    %85 = vmatpush1.msra.mxu0 0.0
    %86 = vmatprep.subr.mxu0 0.0
    %87 = vmatpush1.msra.mxu0 0.0
    %88 = vmatprep.subr.mxu0 0.0
    %89 = vmatpush1.msra.mxu0 0.0
    %90 = vmatprep.subr.mxu0 0.0
    %91 = vmatpush1.msra.mxu0 0.0
    %92 = vmatprep.subr.mxu0 0.0
    %93 = vmatpush1.msra.mxu0 0.0
    %94 = vmatprep.subr.mxu0 0.0
    %95 = vmatpush1.msra.mxu0 0.0
    %96 = vmatprep.subr.mxu0 0.0
    %97 = vmatpush1.msra.mxu0 0.0
    %98 = vmatprep.subr.mxu0 0.0
    %99 = vmatpush1.msra.mxu0 0.0
    %100 = vmatprep.subr.mxu0 0.0
    %101 = vmatpush1.msra.mxu0 0.0
    %102 = vmatprep.subr.mxu0 0.0
    %103 = vmatpush1.msra.mxu0 0.0
    %104 = vmatprep.subr.mxu0 0.0
    %105 = vmatpush1.msra.mxu0 0.0
    %106 = vmatprep.subr.mxu0 0.0
    %107 = vmatpush1.msra.mxu0 0.0
    %108 = vmatprep.subr.mxu0 0.0
    %109 = vmatpush1.msra.mxu0 0.0
    %110 = vmatprep.subr.mxu0 0.0
    %111 = vmatpush1.msra.mxu0 0.0
    %112 = vmatprep.subr.mxu0 0.0
    %113 = vmatpush1.msra.mxu0 0.0
    %114 = vmatprep.subr.mxu0 0.0
    %115 = vmatpush1.msra.mxu0 0.0
    %116 = vmatprep.subr.mxu0 0.0
    %117 = vmatpush1.msra.mxu0 0.0
    %118 = vmatprep.subr.mxu0 0.0
    %119 = vmatpush1.msra.mxu0 0.0
    %120 = vmatprep.subr.mxu0 0.0
    %121 = vmatpush1.msra.mxu0 0.0
    %122 = vmatprep.subr.mxu0 0.0
    %123 = vmatpush1.msra.mxu0 0.0
    %124 = vmatprep.subr.mxu0 0.0
    %125 = vmatpush1.msra.mxu0 0.0
    %126 = vmatprep.subr.mxu0 0.0
    %127 = vmatpush1.msra.mxu0 0.0
    %128 = vmatprep.subr.mxu0 0.0
    %129 = vmatpush1.msra.mxu0 0.0
    %130 = vmatprep.subr.mxu0 0.0
    %131 = vmatpush1.msra.mxu0 0.0
    %132 = vmatprep.subr.mxu0 0.0
    %133 = vmatpush1.msra.mxu0 0.0
    %134 = vmatprep.mubr.f32.mxu0 0.0
    %v135 = vand.u32 %v56, 4294901760
    %v136 = vsub.f32 %v56, %v135
    %v137 = vand.u32 %v136, 4294901760
    %v138 = vsub.f32 %v136, %v137
    %v139 = vand.u32 %v138, 4294901760
    %140 = vmatmul.mubr.f32.gmra.mrb[0].mxu0 %v139
    %v141 = vpop.f32.mrb[0].mxu0
    %v142 = vadd.f32 %v52, %v141
    %v143 = vpop.f32.mrb[0].mxu0
    %144 = vmatprep.mubr.f32.mxu0 0.0
    %v145 = vand.u32 %v59, 4294901760
    %v146 = vsub.f32 %v59, %v145
    %v147 = vand.u32 %v146, 4294901760
    %v148 = vsub.f32 %v146, %v147
    %v149 = vand.u32 %v148, 4294901760
    %150 = vmatmul.mubr.f32.gmra.mrb[0].mxu0 %v149
    %v151 = vpop.f32.mrb[0].mxu0
    %v152 = vadd.f32 %v52, %v151
    %v153 = vpop.f32.mrb[0].mxu0
    %154 = vdwg.mxu0
    %155 = vmatprep.subr.mxu0 0.0
    %v156 = vand.u32 %v42, 4294901760
    %v157 = vsub.f32 %v42, %v156
    %v158 = vand.u32 %v157, 4294901760
    %v159 = vsub.f32 %v157, %v158
    %v160 = vand.u32 %v159, 4294901760
    %161 = vmatpush1.msra.mxu0 %v160
    %162 = vmatprep.subr.mxu0 0.0
    %v163 = vand.u32 %v43, 4294901760
    %v164 = vsub.f32 %v43, %v163
    %v165 = vand.u32 %v164, 4294901760
    %v166 = vsub.f32 %v164, %v165
    %v167 = vand.u32 %v166, 4294901760
    %168 = vmatpush1.msra.mxu0 %v167
    %169 = vmatprep.subr.mxu0 0.0
    %v170 = vand.u32 %v44, 4294901760
    %v171 = vsub.f32 %v44, %v170
    %v172 = vand.u32 %v171, 4294901760
    %v173 = vsub.f32 %v171, %v172
    %v174 = vand.u32 %v173, 4294901760
    %175 = vmatpush1.msra.mxu0 %v174
    %176 = vmatprep.subr.mxu0 0.0
    %v177 = vand.u32 %v45, 4294901760
    %v178 = vsub.f32 %v45, %v177
    %v179 = vand.u32 %v178, 4294901760
    %v180 = vsub.f32 %v178, %v179
    %v181 = vand.u32 %v180, 4294901760
    %182 = vmatpush1.msra.mxu0 %v181
    %183 = vmatprep.subr.mxu0 0.0
    %v184 = vand.u32 %v63, 4294901760
    %v185 = vsub.f32 %v63, %v184
    %v186 = vand.u32 %v185, 4294901760
    %v187 = vsub.f32 %v185, %v186
    %v188 = vand.u32 %v187, 4294901760
    %189 = vmatpush1.msra.mxu0 %v188
    %190 = vmatprep.subr.mxu0 0.0
    %191 = vmatpush1.msra.mxu0 0.0
    %192 = vmatprep.subr.mxu0 0.0
    %193 = vmatpush1.msra.mxu0 0.0
    %194 = vmatprep.subr.mxu0 0.0
    %195 = vmatpush1.msra.mxu0 0.0
    %196 = vmatprep.subr.mxu0 0.0
    %197 = vmatpush1.msra.mxu0 0.0
    %198 = vmatprep.subr.mxu0 0.0
    %199 = vmatpush1.msra.mxu0 0.0
    %200 = vmatprep.subr.mxu0 0.0
    %201 = vmatpush1.msra.mxu0 0.0
    %202 = vmatprep.subr.mxu0 0.0
    %203 = vmatpush1.msra.mxu0 0.0
    %204 = vmatprep.subr.mxu0 0.0
    %205 = vmatpush1.msra.mxu0 0.0
    %206 = vmatprep.subr.mxu0 0.0
    %207 = vmatpush1.msra.mxu0 0.0
    %208 = vmatprep.subr.mxu0 0.0
    %209 = vmatpush1.msra.mxu0 0.0
    %210 = vmatprep.subr.mxu0 0.0
    %211 = vmatpush1.msra.mxu0 0.0
    %212 = vmatprep.subr.mxu0 0.0
    %213 = vmatpush1.msra.mxu0 0.0
    %214 = vmatprep.subr.mxu0 0.0
    %215 = vmatpush1.msra.mxu0 0.0
    %216 = vmatprep.subr.mxu0 0.0
    %217 = vmatpush1.msra.mxu0 0.0
    %218 = vmatprep.subr.mxu0 0.0
    %219 = vmatpush1.msra.mxu0 0.0
    %220 = vmatprep.subr.mxu0 0.0
    %221 = vmatpush1.msra.mxu0 0.0
    %222 = vmatprep.subr.mxu0 0.0
    %223 = vmatpush1.msra.mxu0 0.0
    %224 = vmatprep.subr.mxu0 0.0
    %225 = vmatpush1.msra.mxu0 0.0
    %226 = vmatprep.subr.mxu0 0.0
    %227 = vmatpush1.msra.mxu0 0.0
    %228 = vmatprep.subr.mxu0 0.0
    %229 = vmatpush1.msra.mxu0 0.0
    %230 = vmatprep.subr.mxu0 0.0
    %231 = vmatpush1.msra.mxu0 0.0
    %232 = vmatprep.subr.mxu0 0.0
    %233 = vmatpush1.msra.mxu0 0.0
    %234 = vmatprep.subr.mxu0 0.0
    %235 = vmatpush1.msra.mxu0 0.0
    %236 = vmatprep.subr.mxu0 0.0
    %237 = vmatpush1.msra.mxu0 0.0
    %238 = vmatprep.subr.mxu0 0.0
    %239 = vmatpush1.msra.mxu0 0.0
    %240 = vmatprep.subr.mxu0 0.0
    %241 = vmatpush1.msra.mxu0 0.0
    %242 = vmatprep.subr.mxu0 0.0
    %243 = vmatpush1.msra.mxu0 0.0
    %244 = vmatprep.mubr.f32.mxu0 0.0
    %v245 = vand.u32 %v56, 4294901760
    %246 = vmatmul.mubr.f32.gmra.mrb[0].mxu0 %v245
    %v247 = vpop.f32.mrb[0].mxu0
    %v248 = vadd.f32 %v142, %v247
    %v249 = vpop.f32.mrb[0].mxu0
    %250 = vmatprep.mubr.f32.mxu0 0.0
    %v251 = vand.u32 %v59, 4294901760
    %252 = vmatmul.mubr.f32.gmra.mrb[0].mxu0 %v251
    %v253 = vpop.f32.mrb[0].mxu0
    %v254 = vadd.f32 %v152, %v253
    %v255 = vpop.f32.mrb[0].mxu0
    %256 = vdwg.mxu0
    %257 = vmatprep.subr.mxu0 0.0
    %v258 = vand.u32 %v42, 4294901760
    %v259 = vsub.f32 %v42, %v258
    %260 = vmatpush1.msra.mxu0 %v259
    %261 = vmatprep.subr.mxu0 0.0
    %v262 = vand.u32 %v43, 4294901760
    %v263 = vsub.f32 %v43, %v262
    %264 = vmatpush1.msra.mxu0 %v263
    %265 = vmatprep.subr.mxu0 0.0
    %v266 = vand.u32 %v44, 4294901760
    %v267 = vsub.f32 %v44, %v266
    %268 = vmatpush1.msra.mxu0 %v267
    %269 = vmatprep.subr.mxu0 0.0
    %v270 = vand.u32 %v45, 4294901760
    %v271 = vsub.f32 %v45, %v270
    %272 = vmatpush1.msra.mxu0 %v271
    %273 = vmatprep.subr.mxu0 0.0
    %v274 = vand.u32 %v63, 4294901760
    %v275 = vsub.f32 %v63, %v274
    %276 = vmatpush1.msra.mxu0 %v275
    %277 = vmatprep.subr.mxu0 0.0
    %278 = vmatpush1.msra.mxu0 0.0
    %279 = vmatprep.subr.mxu0 0.0
    %280 = vmatpush1.msra.mxu0 0.0
    %281 = vmatprep.subr.mxu0 0.0
    %282 = vmatpush1.msra.mxu0 0.0
    %283 = vmatprep.subr.mxu0 0.0
    %284 = vmatpush1.msra.mxu0 0.0
    %285 = vmatprep.subr.mxu0 0.0
    %286 = vmatpush1.msra.mxu0 0.0
    %287 = vmatprep.subr.mxu0 0.0
    %288 = vmatpush1.msra.mxu0 0.0
    %289 = vmatprep.subr.mxu0 0.0
    %290 = vmatpush1.msra.mxu0 0.0
    %291 = vmatprep.subr.mxu0 0.0
    %292 = vmatpush1.msra.mxu0 0.0
    %293 = vmatprep.subr.mxu0 0.0
    %294 = vmatpush1.msra.mxu0 0.0
    %295 = vmatprep.subr.mxu0 0.0
    %296 = vmatpush1.msra.mxu0 0.0
    %297 = vmatprep.subr.mxu0 0.0
    %298 = vmatpush1.msra.mxu0 0.0
    %299 = vmatprep.subr.mxu0 0.0
    %300 = vmatpush1.msra.mxu0 0.0
    %301 = vmatprep.subr.mxu0 0.0
    %302 = vmatpush1.msra.mxu0 0.0
    %303 = vmatprep.subr.mxu0 0.0
    %304 = vmatpush1.msra.mxu0 0.0
    %305 = vmatprep.subr.mxu0 0.0
    %306 = vmatpush1.msra.mxu0 0.0
    %307 = vmatprep.subr.mxu0 0.0
    %308 = vmatpush1.msra.mxu0 0.0
    %309 = vmatprep.subr.mxu0 0.0
    %310 = vmatpush1.msra.mxu0 0.0
    %311 = vmatprep.subr.mxu0 0.0
    %312 = vmatpush1.msra.mxu0 0.0
    %313 = vmatprep.subr.mxu0 0.0
    %314 = vmatpush1.msra.mxu0 0.0
    %315 = vmatprep.subr.mxu0 0.0
    %316 = vmatpush1.msra.mxu0 0.0
    %317 = vmatprep.subr.mxu0 0.0
    %318 = vmatpush1.msra.mxu0 0.0
    %319 = vmatprep.subr.mxu0 0.0
    %320 = vmatpush1.msra.mxu0 0.0
    %321 = vmatprep.subr.mxu0 0.0
    %322 = vmatpush1.msra.mxu0 0.0
    %323 = vmatprep.subr.mxu0 0.0
    %324 = vmatpush1.msra.mxu0 0.0
    %325 = vmatprep.subr.mxu0 0.0
    %326 = vmatpush1.msra.mxu0 0.0
    %327 = vmatprep.subr.mxu0 0.0
    %328 = vmatpush1.msra.mxu0 0.0
    %329 = vmatprep.subr.mxu0 0.0
    %330 = vmatpush1.msra.mxu0 0.0
    %331 = vmatprep.mubr.f32.mxu0 0.0
    %v332 = vand.u32 %v56, 4294901760
    %v333 = vsub.f32 %v56, %v332
    %334 = vmatmul.mubr.f32.gmra.mrb[0].mxu0 %v333
    %v335 = vpop.f32.mrb[0].mxu0
    %v336 = vadd.f32 %v248, %v335
    %v337 = vpop.f32.mrb[0].mxu0
    %338 = vmatprep.mubr.f32.mxu0 0.0
    %v339 = vand.u32 %v59, 4294901760
    %v340 = vsub.f32 %v59, %v339
    %341 = vmatmul.mubr.f32.gmra.mrb[0].mxu0 %v340
    %v342 = vpop.f32.mrb[0].mxu0
    %v343 = vadd.f32 %v254, %v342
    %v344 = vpop.f32.mrb[0].mxu0
    %345 = vdwg.mxu0
    %346 = vmatprep.subr.mxu0 0.0
    %v347 = vand.u32 %v42, 4294901760
    %348 = vmatpush1.msra.mxu0 %v347
    %349 = vmatprep.subr.mxu0 0.0
    %v350 = vand.u32 %v43, 4294901760
    %351 = vmatpush1.msra.mxu0 %v350
    %352 = vmatprep.subr.mxu0 0.0
    %v353 = vand.u32 %v44, 4294901760
    %354 = vmatpush1.msra.mxu0 %v353
    %355 = vmatprep.subr.mxu0 0.0
    %v356 = vand.u32 %v45, 4294901760
    %357 = vmatpush1.msra.mxu0 %v356
    %358 = vmatprep.subr.mxu0 0.0
    %v359 = vand.u32 %v63, 4294901760
    %360 = vmatpush1.msra.mxu0 %v359
    %361 = vmatprep.subr.mxu0 0.0
    %362 = vmatpush1.msra.mxu0 0.0
    %363 = vmatprep.subr.mxu0 0.0
    %364 = vmatpush1.msra.mxu0 0.0
    %365 = vmatprep.subr.mxu0 0.0
    %366 = vmatpush1.msra.mxu0 0.0
    %367 = vmatprep.subr.mxu0 0.0
    %368 = vmatpush1.msra.mxu0 0.0
    %369 = vmatprep.subr.mxu0 0.0
    %370 = vmatpush1.msra.mxu0 0.0
    %371 = vmatprep.subr.mxu0 0.0
    %372 = vmatpush1.msra.mxu0 0.0
    %373 = vmatprep.subr.mxu0 0.0
    %374 = vmatpush1.msra.mxu0 0.0
    %375 = vmatprep.subr.mxu0 0.0
    %376 = vmatpush1.msra.mxu0 0.0
    %377 = vmatprep.subr.mxu0 0.0
    %378 = vmatpush1.msra.mxu0 0.0
    %379 = vmatprep.subr.mxu0 0.0
    %380 = vmatpush1.msra.mxu0 0.0
    %381 = vmatprep.subr.mxu0 0.0
    %382 = vmatpush1.msra.mxu0 0.0
    %383 = vmatprep.subr.mxu0 0.0
    %384 = vmatpush1.msra.mxu0 0.0
    %385 = vmatprep.subr.mxu0 0.0
    %386 = vmatpush1.msra.mxu0 0.0
    %387 = vmatprep.subr.mxu0 0.0
    %388 = vmatpush1.msra.mxu0 0.0
    %389 = vmatprep.subr.mxu0 0.0
    %390 = vmatpush1.msra.mxu0 0.0
    %391 = vmatprep.subr.mxu0 0.0
    %392 = vmatpush1.msra.mxu0 0.0
    %393 = vmatprep.subr.mxu0 0.0
    %394 = vmatpush1.msra.mxu0 0.0
    %395 = vmatprep.subr.mxu0 0.0
    %396 = vmatpush1.msra.mxu0 0.0
    %397 = vmatprep.subr.mxu0 0.0
    %398 = vmatpush1.msra.mxu0 0.0
    %399 = vmatprep.subr.mxu0 0.0
    %400 = vmatpush1.msra.mxu0 0.0
    %401 = vmatprep.subr.mxu0 0.0
    %402 = vmatpush1.msra.mxu0 0.0
    %403 = vmatprep.subr.mxu0 0.0
    %404 = vmatpush1.msra.mxu0 0.0
    %405 = vmatprep.subr.mxu0 0.0
    %406 = vmatpush1.msra.mxu0 0.0
    %407 = vmatprep.subr.mxu0 0.0
    %408 = vmatpush1.msra.mxu0 0.0
    %409 = vmatprep.subr.mxu0 0.0
    %410 = vmatpush1.msra.mxu0 0.0
    %411 = vmatprep.subr.mxu0 0.0
    %412 = vmatpush1.msra.mxu0 0.0
    %413 = vmatprep.subr.mxu0 0.0
    %414 = vmatpush1.msra.mxu0 0.0
    %415 = vmatprep.mubr.f32.mxu0 0.0
    %v416 = vand.u32 %v56, 4294901760
    %v417 = vsub.f32 %v56, %v416
    %v418 = vand.u32 %v417, 4294901760
    %419 = vmatmul.mubr.f32.gmra.mrb[0].mxu0 %v418
    %v420 = vpop.f32.mrb[0].mxu0
    %v421 = vadd.f32 %v336, %v420
    %v422 = vpop.f32.mrb[0].mxu0
    %423 = vmatprep.mubr.f32.mxu0 0.0
    %v424 = vand.u32 %v59, 4294901760
    %v425 = vsub.f32 %v59, %v424
    %v426 = vand.u32 %v425, 4294901760
    %427 = vmatmul.mubr.f32.gmra.mrb[0].mxu0 %v426
    %v428 = vpop.f32.mrb[0].mxu0
    %v429 = vadd.f32 %v343, %v428
    %v430 = vpop.f32.mrb[0].mxu0
    %431 = vdwg.mxu0
    %432 = vmatprep.subr.mxu0 0.0
    %v433 = vand.u32 %v42, 4294901760
    %v434 = vsub.f32 %v42, %v433
    %v435 = vand.u32 %v434, 4294901760
    %436 = vmatpush1.msra.mxu0 %v435
    %437 = vmatprep.subr.mxu0 0.0
    %v438 = vand.u32 %v43, 4294901760
    %v439 = vsub.f32 %v43, %v438
    %v440 = vand.u32 %v439, 4294901760
    %441 = vmatpush1.msra.mxu0 %v440
    %442 = vmatprep.subr.mxu0 0.0
    %v443 = vand.u32 %v44, 4294901760
    %v444 = vsub.f32 %v44, %v443
    %v445 = vand.u32 %v444, 4294901760
    %446 = vmatpush1.msra.mxu0 %v445
    %447 = vmatprep.subr.mxu0 0.0
    %v448 = vand.u32 %v45, 4294901760
    %v449 = vsub.f32 %v45, %v448
    %v450 = vand.u32 %v449, 4294901760
    %451 = vmatpush1.msra.mxu0 %v450
    %452 = vmatprep.subr.mxu0 0.0
    %v453 = vand.u32 %v63, 4294901760
    %v454 = vsub.f32 %v63, %v453
    %v455 = vand.u32 %v454, 4294901760
    %456 = vmatpush1.msra.mxu0 %v455
    %457 = vmatprep.subr.mxu0 0.0
    %458 = vmatpush1.msra.mxu0 0.0
    %459 = vmatprep.subr.mxu0 0.0
    %460 = vmatpush1.msra.mxu0 0.0
    %461 = vmatprep.subr.mxu0 0.0
    %462 = vmatpush1.msra.mxu0 0.0
    %463 = vmatprep.subr.mxu0 0.0
    %464 = vmatpush1.msra.mxu0 0.0
    %465 = vmatprep.subr.mxu0 0.0
    %466 = vmatpush1.msra.mxu0 0.0
    %467 = vmatprep.subr.mxu0 0.0
    %468 = vmatpush1.msra.mxu0 0.0
    %469 = vmatprep.subr.mxu0 0.0
    %470 = vmatpush1.msra.mxu0 0.0
    %471 = vmatprep.subr.mxu0 0.0
    %472 = vmatpush1.msra.mxu0 0.0
    %473 = vmatprep.subr.mxu0 0.0
    %474 = vmatpush1.msra.mxu0 0.0
    %475 = vmatprep.subr.mxu0 0.0
    %476 = vmatpush1.msra.mxu0 0.0
    %477 = vmatprep.subr.mxu0 0.0
    %478 = vmatpush1.msra.mxu0 0.0
    %479 = vmatprep.subr.mxu0 0.0
    %480 = vmatpush1.msra.mxu0 0.0
    %481 = vmatprep.subr.mxu0 0.0
    %482 = vmatpush1.msra.mxu0 0.0
    %483 = vmatprep.subr.mxu0 0.0
    %484 = vmatpush1.msra.mxu0 0.0
    %485 = vmatprep.subr.mxu0 0.0
    %486 = vmatpush1.msra.mxu0 0.0
    %487 = vmatprep.subr.mxu0 0.0
    %488 = vmatpush1.msra.mxu0 0.0
    %489 = vmatprep.subr.mxu0 0.0
    %490 = vmatpush1.msra.mxu0 0.0
    %491 = vmatprep.subr.mxu0 0.0
    %492 = vmatpush1.msra.mxu0 0.0
    %493 = vmatprep.subr.mxu0 0.0
    %494 = vmatpush1.msra.mxu0 0.0
    %495 = vmatprep.subr.mxu0 0.0
    %496 = vmatpush1.msra.mxu0 0.0
    %497 = vmatprep.subr.mxu0 0.0
    %498 = vmatpush1.msra.mxu0 0.0
    %499 = vmatprep.subr.mxu0 0.0
    %500 = vmatpush1.msra.mxu0 0.0
    %501 = vmatprep.subr.mxu0 0.0
    %502 = vmatpush1.msra.mxu0 0.0
    %503 = vmatprep.subr.mxu0 0.0
    %504 = vmatpush1.msra.mxu0 0.0
    %505 = vmatprep.subr.mxu0 0.0
    %506 = vmatpush1.msra.mxu0 0.0
    %507 = vmatprep.subr.mxu0 0.0
    %508 = vmatpush1.msra.mxu0 0.0
    %509 = vmatprep.subr.mxu0 0.0
    %510 = vmatpush1.msra.mxu0 0.0
    %511 = vmatprep.mubr.f32.mxu0 0.0
    %v512 = vand.u32 %v56, 4294901760
    %513 = vmatmul.mubr.f32.gmra.mrb[0].mxu0 %v512
    %v514 = vpop.f32.mrb[0].mxu0
    %v515 = vadd.f32 %v421, %v514
    %v516 = vpop.f32.mrb[0].mxu0
    %517 = vmatprep.mubr.f32.mxu0 0.0
    %v518 = vand.u32 %v59, 4294901760
    %519 = vmatmul.mubr.f32.gmra.mrb[0].mxu0 %v518
    %v520 = vpop.f32.mrb[0].mxu0
    %v521 = vadd.f32 %v429, %v520
    %v522 = vpop.f32.mrb[0].mxu0
    %523 = vdwg.mxu0
    %524 = vmatprep.subr.mxu0 0.0
    %v525 = vand.u32 %v42, 4294901760
    %526 = vmatpush1.msra.mxu0 %v525
    %527 = vmatprep.subr.mxu0 0.0
    %v528 = vand.u32 %v43, 4294901760
    %529 = vmatpush1.msra.mxu0 %v528
    %530 = vmatprep.subr.mxu0 0.0
    %v531 = vand.u32 %v44, 4294901760
    %532 = vmatpush1.msra.mxu0 %v531
    %533 = vmatprep.subr.mxu0 0.0
    %v534 = vand.u32 %v45, 4294901760
    %535 = vmatpush1.msra.mxu0 %v534
    %536 = vmatprep.subr.mxu0 0.0
    %v537 = vand.u32 %v63, 4294901760
    %538 = vmatpush1.msra.mxu0 %v537
    %539 = vmatprep.subr.mxu0 0.0
    %540 = vmatpush1.msra.mxu0 0.0
    %541 = vmatprep.subr.mxu0 0.0
    %542 = vmatpush1.msra.mxu0 0.0
    %543 = vmatprep.subr.mxu0 0.0
    %544 = vmatpush1.msra.mxu0 0.0
    %545 = vmatprep.subr.mxu0 0.0
    %546 = vmatpush1.msra.mxu0 0.0
    %547 = vmatprep.subr.mxu0 0.0
    %548 = vmatpush1.msra.mxu0 0.0
    %549 = vmatprep.subr.mxu0 0.0
    %550 = vmatpush1.msra.mxu0 0.0
    %551 = vmatprep.subr.mxu0 0.0
    %552 = vmatpush1.msra.mxu0 0.0
    %553 = vmatprep.subr.mxu0 0.0
    %554 = vmatpush1.msra.mxu0 0.0
    %555 = vmatprep.subr.mxu0 0.0
    %556 = vmatpush1.msra.mxu0 0.0
    %557 = vmatprep.subr.mxu0 0.0
    %558 = vmatpush1.msra.mxu0 0.0
    %559 = vmatprep.subr.mxu0 0.0
    %560 = vmatpush1.msra.mxu0 0.0
    %561 = vmatprep.subr.mxu0 0.0
    %562 = vmatpush1.msra.mxu0 0.0
    %563 = vmatprep.subr.mxu0 0.0
    %564 = vmatpush1.msra.mxu0 0.0
    %565 = vmatprep.subr.mxu0 0.0
    %566 = vmatpush1.msra.mxu0 0.0
    %567 = vmatprep.subr.mxu0 0.0
    %568 = vmatpush1.msra.mxu0 0.0
    %569 = vmatprep.subr.mxu0 0.0
    %570 = vmatpush1.msra.mxu0 0.0
    %571 = vmatprep.subr.mxu0 0.0
    %572 = vmatpush1.msra.mxu0 0.0
    %573 = vmatprep.subr.mxu0 0.0
    %574 = vmatpush1.msra.mxu0 0.0
    %575 = vmatprep.subr.mxu0 0.0
    %576 = vmatpush1.msra.mxu0 0.0
    %577 = vmatprep.subr.mxu0 0.0
    %578 = vmatpush1.msra.mxu0 0.0
    %579 = vmatprep.subr.mxu0 0.0
    %580 = vmatpush1.msra.mxu0 0.0
    %581 = vmatprep.subr.mxu0 0.0
    %582 = vmatpush1.msra.mxu0 0.0
    %583 = vmatprep.subr.mxu0 0.0
    %584 = vmatpush1.msra.mxu0 0.0
    %585 = vmatprep.subr.mxu0 0.0
    %586 = vmatpush1.msra.mxu0 0.0
    %587 = vmatprep.subr.mxu0 0.0
    %588 = vmatpush1.msra.mxu0 0.0
    %589 = vmatprep.subr.mxu0 0.0
    %590 = vmatpush1.msra.mxu0 0.0
    %591 = vmatprep.subr.mxu0 0.0
    %592 = vmatpush1.msra.mxu0 0.0
    %593 = vmatprep.mubr.f32.mxu0 0.0
    %v594 = vand.u32 %v56, 4294901760
    %595 = vmatmul.mubr.f32.gmra.mrb[0].mxu0 %v594
    %v596 = vpop.f32.mrb[0].mxu0
    %v597 = vadd.f32 %v515, %v596
    %v598 = vpop.f32.mrb[0].mxu0
    %599 = vmatprep.mubr.f32.mxu0 0.0
    %v600 = vand.u32 %v59, 4294901760
    %601 = vmatmul.mubr.f32.gmra.mrb[0].mxu0 %v600
    %v602 = vpop.f32.mrb[0].mxu0
    %v603 = vadd.f32 %v521, %v602
    %v604 = vpop.f32.mrb[0].mxu0
    %605 = vdwg.mxu0
    %v606 = vmax.f32 %v597, 0.0
    %v607 = vmax.f32 %v603, 0.0
    %v608 = vld [vmem:[%s3] sm:$0xff]
    %v609 = vld [vmem:[%s3 + $0x8] sm:$0xff]
    %v610 = vld [vmem:[%s3 + $0x10] sm:$0xff]
    %v611 = vld [vmem:[%s3 + $0x18] sm:$0xff]
    %v612 = vld [vmem:[%s3 + $0x20] sm:$0xff]
    %v613 = vld [vmem:[%s3 + $0x28] sm:$0xff]
    %v614 = vld [vmem:[%s3 + $0x30] sm:$0xff]
    %v615 = vld [vmem:[%s3 + $0x38] sm:$0xff]
    %v616 = vld [vmem:[%s3 + $0x40] sm:$0xff]
    %v617 = vld [vmem:[%s3 + $0x48] sm:$0xff]
    %v618 = vld [vmem:[%s3 + $0x50] sm:$0xff]
    %v619 = vld [vmem:[%s3 + $0x58] sm:$0xff]
    %v620 = vld [vmem:[%s3 + $0x60] sm:$0xff]
    %v621 = vld [vmem:[%s3 + $0x68] sm:$0xff]
    %v622 = vld [vmem:[%s3 + $0x70] sm:$0xff]
    %v623 = vld [vmem:[%s3 + $0x78] sm:$0xff]
    %v624 = vld [vmem:[%s4] sm:$0x1]
    %v626 = vlaneseq
    %v627 = vshrl.u32 %v626, 7
    %v628 = vsub.s32 0, %v627
    %v629 = vrot.slane %v624, %v628
    %631 = vmatprep.subr.mxu0 0.0
    %v632 = vand.u32 %v608, 4294901760
    %633 = vmatpush1.msra.mxu0 %v632
    %634 = vmatprep.subr.mxu0 0.0
    %v635 = vand.u32 %v609, 4294901760
    %636 = vmatpush1.msra.mxu0 %v635
    %637 = vmatprep.subr.mxu0 0.0
    %v638 = vand.u32 %v610, 4294901760
    %639 = vmatpush1.msra.mxu0 %v638
    %640 = vmatprep.subr.mxu0 0.0
    %v641 = vand.u32 %v611, 4294901760
    %642 = vmatpush1.msra.mxu0 %v641
    %643 = vmatprep.subr.mxu0 0.0
    %v644 = vand.u32 %v612, 4294901760
    %645 = vmatpush1.msra.mxu0 %v644
    %646 = vmatprep.subr.mxu0 0.0
    %v647 = vand.u32 %v613, 4294901760
    %648 = vmatpush1.msra.mxu0 %v647
    %649 = vmatprep.subr.mxu0 0.0
    %v650 = vand.u32 %v614, 4294901760
    %651 = vmatpush1.msra.mxu0 %v650
    %652 = vmatprep.subr.mxu0 0.0
    %v653 = vand.u32 %v615, 4294901760
    %654 = vmatpush1.msra.mxu0 %v653
    %655 = vmatprep.subr.mxu0 0.0
    %v656 = vand.u32 %v616, 4294901760
    %657 = vmatpush1.msra.mxu0 %v656
    %658 = vmatprep.subr.mxu0 0.0
    %v659 = vand.u32 %v617, 4294901760
    %660 = vmatpush1.msra.mxu0 %v659
    %661 = vmatprep.subr.mxu0 0.0
    %v662 = vand.u32 %v618, 4294901760
    %663 = vmatpush1.msra.mxu0 %v662
    %664 = vmatprep.subr.mxu0 0.0
    %v665 = vand.u32 %v619, 4294901760
    %666 = vmatpush1.msra.mxu0 %v665
    %667 = vmatprep.subr.mxu0 0.0
    %v668 = vand.u32 %v620, 4294901760
    %669 = vmatpush1.msra.mxu0 %v668
    %670 = vmatprep.subr.mxu0 0.0
    %v671 = vand.u32 %v621, 4294901760
    %672 = vmatpush1.msra.mxu0 %v671
    %673 = vmatprep.subr.mxu0 0.0
    %v674 = vand.u32 %v622, 4294901760
    %675 = vmatpush1.msra.mxu0 %v674
    %676 = vmatprep.subr.mxu0 0.0
    %v677 = vand.u32 %v623, 4294901760
    %678 = vmatpush1.msra.mxu0 %v677
    %679 = vmatprep.subr.mxu0 0.0
    %680 = vmatpush1.msra.mxu0 0.0
    %681 = vmatprep.subr.mxu0 0.0
    %682 = vmatpush1.msra.mxu0 0.0
    %683 = vmatprep.subr.mxu0 0.0
    %684 = vmatpush1.msra.mxu0 0.0
    %685 = vmatprep.subr.mxu0 0.0
    %686 = vmatpush1.msra.mxu0 0.0
    %687 = vmatprep.subr.mxu0 0.0
    %688 = vmatpush1.msra.mxu0 0.0
    %689 = vmatprep.subr.mxu0 0.0
    %690 = vmatpush1.msra.mxu0 0.0
    %691 = vmatprep.subr.mxu0 0.0
    %692 = vmatpush1.msra.mxu0 0.0
    %693 = vmatprep.subr.mxu0 0.0
    %694 = vmatpush1.msra.mxu0 0.0
    %695 = vmatprep.subr.mxu0 0.0
    %696 = vmatpush1.msra.mxu0 0.0
    %697 = vmatprep.subr.mxu0 0.0
    %698 = vmatpush1.msra.mxu0 0.0
    %699 = vmatprep.subr.mxu0 0.0
    %700 = vmatpush1.msra.mxu0 0.0
    %701 = vmatprep.subr.mxu0 0.0
    %702 = vmatpush1.msra.mxu0 0.0
    %703 = vmatprep.subr.mxu0 0.0
    %704 = vmatpush1.msra.mxu0 0.0
    %705 = vmatprep.subr.mxu0 0.0
    %706 = vmatpush1.msra.mxu0 0.0
    %707 = vmatprep.subr.mxu0 0.0
    %708 = vmatpush1.msra.mxu0 0.0
    %709 = vmatprep.subr.mxu0 0.0
    %710 = vmatpush1.msra.mxu0 0.0
    %711 = vmatprep.mubr.f32.mxu0 0.0
    %v712 = vand.u32 %v606, 4294901760
    %v713 = vsub.f32 %v606, %v712
    %v714 = vand.u32 %v713, 4294901760
    %v715 = vsub.f32 %v713, %v714
    %v716 = vand.u32 %v715, 4294901760
    %717 = vmatmul.mubr.f32.gmra.mrb[0].mxu0 %v716
    %v718 = vpop.f32.mrb[0].mxu0
    %v719 = vadd.f32 %v629, %v718
    %v720 = vpop.f32.mrb[0].mxu0
    %721 = vmatprep.mubr.f32.mxu0 0.0
    %v722 = vand.u32 %v607, 4294901760
    %v723 = vsub.f32 %v607, %v722
    %v724 = vand.u32 %v723, 4294901760
    %v725 = vsub.f32 %v723, %v724
    %v726 = vand.u32 %v725, 4294901760
    %727 = vmatmul.mubr.f32.gmra.mrb[0].mxu0 %v726
    %v728 = vpop.f32.mrb[0].mxu0
    %v729 = vadd.f32 %v629, %v728
    %v730 = vpop.f32.mrb[0].mxu0
    %731 = vdwg.mxu0
    %732 = vmatprep.subr.mxu0 0.0
    %v733 = vand.u32 %v608, 4294901760
    %v734 = vsub.f32 %v608, %v733
    %v735 = vand.u32 %v734, 4294901760
    %v736 = vsub.f32 %v734, %v735
    %v737 = vand.u32 %v736, 4294901760
    %738 = vmatpush1.msra.mxu0 %v737
    %739 = vmatprep.subr.mxu0 0.0
    %v740 = vand.u32 %v609, 4294901760
    %v741 = vsub.f32 %v609, %v740
    %v742 = vand.u32 %v741, 4294901760
    %v743 = vsub.f32 %v741, %v742
    %v744 = vand.u32 %v743, 4294901760
    %745 = vmatpush1.msra.mxu0 %v744
    %746 = vmatprep.subr.mxu0 0.0
    %v747 = vand.u32 %v610, 4294901760
    %v748 = vsub.f32 %v610, %v747
    %v749 = vand.u32 %v748, 4294901760
    %v750 = vsub.f32 %v748, %v749
    %v751 = vand.u32 %v750, 4294901760
    %752 = vmatpush1.msra.mxu0 %v751
    %753 = vmatprep.subr.mxu0 0.0
    %v754 = vand.u32 %v611, 4294901760
    %v755 = vsub.f32 %v611, %v754
    %v756 = vand.u32 %v755, 4294901760
    %v757 = vsub.f32 %v755, %v756
    %v758 = vand.u32 %v757, 4294901760
    %759 = vmatpush1.msra.mxu0 %v758
    %760 = vmatprep.subr.mxu0 0.0
    %v761 = vand.u32 %v612, 4294901760
    %v762 = vsub.f32 %v612, %v761
    %v763 = vand.u32 %v762, 4294901760
    %v764 = vsub.f32 %v762, %v763
    %v765 = vand.u32 %v764, 4294901760
    %766 = vmatpush1.msra.mxu0 %v765
    %767 = vmatprep.subr.mxu0 0.0
    %v768 = vand.u32 %v613, 4294901760
    %v769 = vsub.f32 %v613, %v768
    %v770 = vand.u32 %v769, 4294901760
    %v771 = vsub.f32 %v769, %v770
    %v772 = vand.u32 %v771, 4294901760
    %773 = vmatpush1.msra.mxu0 %v772
    %774 = vmatprep.subr.mxu0 0.0
    %v775 = vand.u32 %v614, 4294901760
    %v776 = vsub.f32 %v614, %v775
    %v777 = vand.u32 %v776, 4294901760
    %v778 = vsub.f32 %v776, %v777
    %v779 = vand.u32 %v778, 4294901760
    %780 = vmatpush1.msra.mxu0 %v779
    %781 = vmatprep.subr.mxu0 0.0
    %v782 = vand.u32 %v615, 4294901760
    %v783 = vsub.f32 %v615, %v782
    %v784 = vand.u32 %v783, 4294901760
    %v785 = vsub.f32 %v783, %v784
    %v786 = vand.u32 %v785, 4294901760
    %787 = vmatpush1.msra.mxu0 %v786
    %788 = vmatprep.subr.mxu0 0.0
    %v789 = vand.u32 %v616, 4294901760
    %v790 = vsub.f32 %v616, %v789
    %v791 = vand.u32 %v790, 4294901760
    %v792 = vsub.f32 %v790, %v791
    %v793 = vand.u32 %v792, 4294901760
    %794 = vmatpush1.msra.mxu0 %v793
    %795 = vmatprep.subr.mxu0 0.0
    %v796 = vand.u32 %v617, 4294901760
    %v797 = vsub.f32 %v617, %v796
    %v798 = vand.u32 %v797, 4294901760
    %v799 = vsub.f32 %v797, %v798
    %v800 = vand.u32 %v799, 4294901760
    %801 = vmatpush1.msra.mxu0 %v800
    %802 = vmatprep.subr.mxu0 0.0
    %v803 = vand.u32 %v618, 4294901760
    %v804 = vsub.f32 %v618, %v803
    %v805 = vand.u32 %v804, 4294901760
    %v806 = vsub.f32 %v804, %v805
    %v807 = vand.u32 %v806, 4294901760
    %808 = vmatpush1.msra.mxu0 %v807
    %809 = vmatprep.subr.mxu0 0.0
    %v810 = vand.u32 %v619, 4294901760
    %v811 = vsub.f32 %v619, %v810
    %v812 = vand.u32 %v811, 4294901760
    %v813 = vsub.f32 %v811, %v812
    %v814 = vand.u32 %v813, 4294901760
    %815 = vmatpush1.msra.mxu0 %v814
    %816 = vmatprep.subr.mxu0 0.0
    %v817 = vand.u32 %v620, 4294901760
    %v818 = vsub.f32 %v620, %v817
    %v819 = vand.u32 %v818, 4294901760
    %v820 = vsub.f32 %v818, %v819
    %v821 = vand.u32 %v820, 4294901760
    %822 = vmatpush1.msra.mxu0 %v821
    %823 = vmatprep.subr.mxu0 0.0
    %v824 = vand.u32 %v621, 4294901760
    %v825 = vsub.f32 %v621, %v824
    %v826 = vand.u32 %v825, 4294901760
    %v827 = vsub.f32 %v825, %v826
    %v828 = vand.u32 %v827, 4294901760
    %829 = vmatpush1.msra.mxu0 %v828
    %830 = vmatprep.subr.mxu0 0.0
    %v831 = vand.u32 %v622, 4294901760
    %v832 = vsub.f32 %v622, %v831
    %v833 = vand.u32 %v832, 4294901760
    %v834 = vsub.f32 %v832, %v833
    %v835 = vand.u32 %v834, 4294901760
    %836 = vmatpush1.msra.mxu0 %v835
    %837 = vmatprep.subr.mxu0 0.0
    %v838 = vand.u32 %v623, 4294901760
    %v839 = vsub.f32 %v623, %v838
    %v840 = vand.u32 %v839, 4294901760
    %v841 = vsub.f32 %v839, %v840
    %v842 = vand.u32 %v841, 4294901760
    %843 = vmatpush1.msra.mxu0 %v842
    %844 = vmatprep.subr.mxu0 0.0
    %845 = vmatpush1.msra.mxu0 0.0
    %846 = vmatprep.subr.mxu0 0.0
    %847 = vmatpush1.msra.mxu0 0.0
    %848 = vmatprep.subr.mxu0 0.0
    %849 = vmatpush1.msra.mxu0 0.0
    %850 = vmatprep.subr.mxu0 0.0
    %851 = vmatpush1.msra.mxu0 0.0
    %852 = vmatprep.subr.mxu0 0.0
    %853 = vmatpush1.msra.mxu0 0.0
    %854 = vmatprep.subr.mxu0 0.0
    %855 = vmatpush1.msra.mxu0 0.0
    %856 = vmatprep.subr.mxu0 0.0
    %857 = vmatpush1.msra.mxu0 0.0
    %858 = vmatprep.subr.mxu0 0.0
    %859 = vmatpush1.msra.mxu0 0.0
    %860 = vmatprep.subr.mxu0 0.0
    %861 = vmatpush1.msra.mxu0 0.0
    %862 = vmatprep.subr.mxu0 0.0
    %863 = vmatpush1.msra.mxu0 0.0
    %864 = vmatprep.subr.mxu0 0.0
    %865 = vmatpush1.msra.mxu0 0.0
    %866 = vmatprep.subr.mxu0 0.0
    %867 = vmatpush1.msra.mxu0 0.0
    %868 = vmatprep.subr.mxu0 0.0
    %869 = vmatpush1.msra.mxu0 0.0
    %870 = vmatprep.subr.mxu0 0.0
    %871 = vmatpush1.msra.mxu0 0.0
    %872 = vmatprep.subr.mxu0 0.0
    %873 = vmatpush1.msra.mxu0 0.0
    %874 = vmatprep.subr.mxu0 0.0
    %875 = vmatpush1.msra.mxu0 0.0
    %876 = vmatprep.mubr.f32.mxu0 0.0
    %v877 = vand.u32 %v606, 4294901760
    %878 = vmatmul.mubr.f32.gmra.mrb[0].mxu0 %v877
    %v879 = vpop.f32.mrb[0].mxu0
    %v880 = vadd.f32 %v719, %v879
    %v881 = vpop.f32.mrb[0].mxu0
    %882 = vmatprep.mubr.f32.mxu0 0.0
    %v883 = vand.u32 %v607, 4294901760
    %884 = vmatmul.mubr.f32.gmra.mrb[0].mxu0 %v883
    %v885 = vpop.f32.mrb[0].mxu0
    %v886 = vadd.f32 %v729, %v885
    %v887 = vpop.f32.mrb[0].mxu0
    %888 = vdwg.mxu0
    %889 = vmatprep.subr.mxu0 0.0
    %v890 = vand.u32 %v608, 4294901760
    %v891 = vsub.f32 %v608, %v890
    %892 = vmatpush1.msra.mxu0 %v891
    %893 = vmatprep.subr.mxu0 0.0
    %v894 = vand.u32 %v609, 4294901760
    %v895 = vsub.f32 %v609, %v894
    %896 = vmatpush1.msra.mxu0 %v895
    %897 = vmatprep.subr.mxu0 0.0
    %v898 = vand.u32 %v610, 4294901760
    %v899 = vsub.f32 %v610, %v898
    %900 = vmatpush1.msra.mxu0 %v899
    %901 = vmatprep.subr.mxu0 0.0
    %v902 = vand.u32 %v611, 4294901760
    %v903 = vsub.f32 %v611, %v902
    %904 = vmatpush1.msra.mxu0 %v903
    %905 = vmatprep.subr.mxu0 0.0
    %v906 = vand.u32 %v612, 4294901760
    %v907 = vsub.f32 %v612, %v906
    %908 = vmatpush1.msra.mxu0 %v907
    %909 = vmatprep.subr.mxu0 0.0
    %v910 = vand.u32 %v613, 4294901760
    %v911 = vsub.f32 %v613, %v910
    %912 = vmatpush1.msra.mxu0 %v911
    %913 = vmatprep.subr.mxu0 0.0
    %v914 = vand.u32 %v614, 4294901760
    %v915 = vsub.f32 %v614, %v914
    %916 = vmatpush1.msra.mxu0 %v915
    %917 = vmatprep.subr.mxu0 0.0
    %v918 = vand.u32 %v615, 4294901760
    %v919 = vsub.f32 %v615, %v918
    %920 = vmatpush1.msra.mxu0 %v919
    %921 = vmatprep.subr.mxu0 0.0
    %v922 = vand.u32 %v616, 4294901760
    %v923 = vsub.f32 %v616, %v922
    %924 = vmatpush1.msra.mxu0 %v923
    %925 = vmatprep.subr.mxu0 0.0
    %v926 = vand.u32 %v617, 4294901760
    %v927 = vsub.f32 %v617, %v926
    %928 = vmatpush1.msra.mxu0 %v927
    %929 = vmatprep.subr.mxu0 0.0
    %v930 = vand.u32 %v618, 4294901760
    %v931 = vsub.f32 %v618, %v930
    %932 = vmatpush1.msra.mxu0 %v931
    %933 = vmatprep.subr.mxu0 0.0
    %v934 = vand.u32 %v619, 4294901760
    %v935 = vsub.f32 %v619, %v934
    %936 = vmatpush1.msra.mxu0 %v935
    %937 = vmatprep.subr.mxu0 0.0
    %v938 = vand.u32 %v620, 4294901760
    %v939 = vsub.f32 %v620, %v938
    %940 = vmatpush1.msra.mxu0 %v939
    %941 = vmatprep.subr.mxu0 0.0
    %v942 = vand.u32 %v621, 4294901760
    %v943 = vsub.f32 %v621, %v942
    %944 = vmatpush1.msra.mxu0 %v943
    %945 = vmatprep.subr.mxu0 0.0
    %v946 = vand.u32 %v622, 4294901760
    %v947 = vsub.f32 %v622, %v946
    %948 = vmatpush1.msra.mxu0 %v947
    %949 = vmatprep.subr.mxu0 0.0
    %v950 = vand.u32 %v623, 4294901760
    %v951 = vsub.f32 %v623, %v950
    %952 = vmatpush1.msra.mxu0 %v951
    %953 = vmatprep.subr.mxu0 0.0
    %954 = vmatpush1.msra.mxu0 0.0
    %955 = vmatprep.subr.mxu0 0.0
    %956 = vmatpush1.msra.mxu0 0.0
    %957 = vmatprep.subr.mxu0 0.0
    %958 = vmatpush1.msra.mxu0 0.0
    %959 = vmatprep.subr.mxu0 0.0
    %960 = vmatpush1.msra.mxu0 0.0
    %961 = vmatprep.subr.mxu0 0.0
    %962 = vmatpush1.msra.mxu0 0.0
    %963 = vmatprep.subr.mxu0 0.0
    %964 = vmatpush1.msra.mxu0 0.0
    %965 = vmatprep.subr.mxu0 0.0
    %966 = vmatpush1.msra.mxu0 0.0
    %967 = vmatprep.subr.mxu0 0.0
    %968 = vmatpush1.msra.mxu0 0.0
    %969 = vmatprep.subr.mxu0 0.0
    %970 = vmatpush1.msra.mxu0 0.0
    %971 = vmatprep.subr.mxu0 0.0
    %972 = vmatpush1.msra.mxu0 0.0
    %973 = vmatprep.subr.mxu0 0.0
    %974 = vmatpush1.msra.mxu0 0.0
    %975 = vmatprep.subr.mxu0 0.0
    %976 = vmatpush1.msra.mxu0 0.0
    %977 = vmatprep.subr.mxu0 0.0
    %978 = vmatpush1.msra.mxu0 0.0
    %979 = vmatprep.subr.mxu0 0.0
    %980 = vmatpush1.msra.mxu0 0.0
    %981 = vmatprep.subr.mxu0 0.0
    %982 = vmatpush1.msra.mxu0 0.0
    %983 = vmatprep.subr.mxu0 0.0
    %984 = vmatpush1.msra.mxu0 0.0
    %985 = vmatprep.mubr.f32.mxu0 0.0
    %v986 = vand.u32 %v606, 4294901760
    %v987 = vsub.f32 %v606, %v986
    %988 = vmatmul.mubr.f32.gmra.mrb[0].mxu0 %v987
    %v989 = vpop.f32.mrb[0].mxu0
    %v990 = vadd.f32 %v880, %v989
    %v991 = vpop.f32.mrb[0].mxu0
    %992 = vmatprep.mubr.f32.mxu0 0.0
    %v993 = vand.u32 %v607, 4294901760
    %v994 = vsub.f32 %v607, %v993
    %995 = vmatmul.mubr.f32.gmra.mrb[0].mxu0 %v994
    %v996 = vpop.f32.mrb[0].mxu0
    %v997 = vadd.f32 %v886, %v996
    %v998 = vpop.f32.mrb[0].mxu0
    %999 = vdwg.mxu0
    %1000 = vmatprep.subr.mxu0 0.0
    %v1001 = vand.u32 %v608, 4294901760
    %1002 = vmatpush1.msra.mxu0 %v1001
    %1003 = vmatprep.subr.mxu0 0.0
    %v1004 = vand.u32 %v609, 4294901760
    %1005 = vmatpush1.msra.mxu0 %v1004
    %1006 = vmatprep.subr.mxu0 0.0
    %v1007 = vand.u32 %v610, 4294901760
    %1008 = vmatpush1.msra.mxu0 %v1007
    %1009 = vmatprep.subr.mxu0 0.0
    %v1010 = vand.u32 %v611, 4294901760
    %1011 = vmatpush1.msra.mxu0 %v1010
    %1012 = vmatprep.subr.mxu0 0.0
    %v1013 = vand.u32 %v612, 4294901760
    %1014 = vmatpush1.msra.mxu0 %v1013
    %1015 = vmatprep.subr.mxu0 0.0
    %v1016 = vand.u32 %v613, 4294901760
    %1017 = vmatpush1.msra.mxu0 %v1016
    %1018 = vmatprep.subr.mxu0 0.0
    %v1019 = vand.u32 %v614, 4294901760
    %1020 = vmatpush1.msra.mxu0 %v1019
    %1021 = vmatprep.subr.mxu0 0.0
    %v1022 = vand.u32 %v615, 4294901760
    %1023 = vmatpush1.msra.mxu0 %v1022
    %1024 = vmatprep.subr.mxu0 0.0
    %v1025 = vand.u32 %v616, 4294901760
    %1026 = vmatpush1.msra.mxu0 %v1025
    %1027 = vmatprep.subr.mxu0 0.0
    %v1028 = vand.u32 %v617, 4294901760
    %1029 = vmatpush1.msra.mxu0 %v1028
    %1030 = vmatprep.subr.mxu0 0.0
    %v1031 = vand.u32 %v618, 4294901760
    %1032 = vmatpush1.msra.mxu0 %v1031
    %1033 = vmatprep.subr.mxu0 0.0
    %v1034 = vand.u32 %v619, 4294901760
    %1035 = vmatpush1.msra.mxu0 %v1034
    %1036 = vmatprep.subr.mxu0 0.0
    %v1037 = vand.u32 %v620, 4294901760
    %1038 = vmatpush1.msra.mxu0 %v1037
    %1039 = vmatprep.subr.mxu0 0.0
    %v1040 = vand.u32 %v621, 4294901760
    %1041 = vmatpush1.msra.mxu0 %v1040
    %1042 = vmatprep.subr.mxu0 0.0
    %v1043 = vand.u32 %v622, 4294901760
    %1044 = vmatpush1.msra.mxu0 %v1043
    %1045 = vmatprep.subr.mxu0 0.0
    %v1046 = vand.u32 %v623, 4294901760
    %1047 = vmatpush1.msra.mxu0 %v1046
    %1048 = vmatprep.subr.mxu0 0.0
    %1049 = vmatpush1.msra.mxu0 0.0
    %1050 = vmatprep.subr.mxu0 0.0
    %1051 = vmatpush1.msra.mxu0 0.0
    %1052 = vmatprep.subr.mxu0 0.0
    %1053 = vmatpush1.msra.mxu0 0.0
    %1054 = vmatprep.subr.mxu0 0.0
    %1055 = vmatpush1.msra.mxu0 0.0
    %1056 = vmatprep.subr.mxu0 0.0
    %1057 = vmatpush1.msra.mxu0 0.0
    %1058 = vmatprep.subr.mxu0 0.0
    %1059 = vmatpush1.msra.mxu0 0.0
    %1060 = vmatprep.subr.mxu0 0.0
    %1061 = vmatpush1.msra.mxu0 0.0
    %1062 = vmatprep.subr.mxu0 0.0
    %1063 = vmatpush1.msra.mxu0 0.0
    %1064 = vmatprep.subr.mxu0 0.0
    %1065 = vmatpush1.msra.mxu0 0.0
    %1066 = vmatprep.subr.mxu0 0.0
    %1067 = vmatpush1.msra.mxu0 0.0
    %1068 = vmatprep.subr.mxu0 0.0
    %1069 = vmatpush1.msra.mxu0 0.0
    %1070 = vmatprep.subr.mxu0 0.0
    %1071 = vmatpush1.msra.mxu0 0.0
    %1072 = vmatprep.subr.mxu0 0.0
    %1073 = vmatpush1.msra.mxu0 0.0
    %1074 = vmatprep.subr.mxu0 0.0
    %1075 = vmatpush1.msra.mxu0 0.0
    %1076 = vmatprep.subr.mxu0 0.0
    %1077 = vmatpush1.msra.mxu0 0.0
    %1078 = vmatprep.subr.mxu0 0.0
    %1079 = vmatpush1.msra.mxu0 0.0
    %1080 = vmatprep.mubr.f32.mxu0 0.0
    %v1081 = vand.u32 %v606, 4294901760
    %v1082 = vsub.f32 %v606, %v1081
    %v1083 = vand.u32 %v1082, 4294901760
    %1084 = vmatmul.mubr.f32.gmra.mrb[0].mxu0 %v1083
    %v1085 = vpop.f32.mrb[0].mxu0
    %v1086 = vadd.f32 %v990, %v1085
    %v1087 = vpop.f32.mrb[0].mxu0
    %1088 = vmatprep.mubr.f32.mxu0 0.0
    %v1089 = vand.u32 %v607, 4294901760
    %v1090 = vsub.f32 %v607, %v1089
    %v1091 = vand.u32 %v1090, 4294901760
    %1092 = vmatmul.mubr.f32.gmra.mrb[0].mxu0 %v1091
    %v1093 = vpop.f32.mrb[0].mxu0
    %v1094 = vadd.f32 %v997, %v1093
    %v1095 = vpop.f32.mrb[0].mxu0
    %1096 = vdwg.mxu0
    %1097 = vmatprep.subr.mxu0 0.0
    %v1098 = vand.u32 %v608, 4294901760
    %v1099 = vsub.f32 %v608, %v1098
    %v1100 = vand.u32 %v1099, 4294901760
    %1101 = vmatpush1.msra.mxu0 %v1100
    %1102 = vmatprep.subr.mxu0 0.0
    %v1103 = vand.u32 %v609, 4294901760
    %v1104 = vsub.f32 %v609, %v1103
    %v1105 = vand.u32 %v1104, 4294901760
    %1106 = vmatpush1.msra.mxu0 %v1105
    %1107 = vmatprep.subr.mxu0 0.0
    %v1108 = vand.u32 %v610, 4294901760
    %v1109 = vsub.f32 %v610, %v1108
    %v1110 = vand.u32 %v1109, 4294901760
    %1111 = vmatpush1.msra.mxu0 %v1110
    %1112 = vmatprep.subr.mxu0 0.0
    %v1113 = vand.u32 %v611, 4294901760
    %v1114 = vsub.f32 %v611, %v1113
    %v1115 = vand.u32 %v1114, 4294901760
    %1116 = vmatpush1.msra.mxu0 %v1115
    %1117 = vmatprep.subr.mxu0 0.0
    %v1118 = vand.u32 %v612, 4294901760
    %v1119 = vsub.f32 %v612, %v1118
    %v1120 = vand.u32 %v1119, 4294901760
    %1121 = vmatpush1.msra.mxu0 %v1120
    %1122 = vmatprep.subr.mxu0 0.0
    %v1123 = vand.u32 %v613, 4294901760
    %v1124 = vsub.f32 %v613, %v1123
    %v1125 = vand.u32 %v1124, 4294901760
    %1126 = vmatpush1.msra.mxu0 %v1125
    %1127 = vmatprep.subr.mxu0 0.0
    %v1128 = vand.u32 %v614, 4294901760
    %v1129 = vsub.f32 %v614, %v1128
    %v1130 = vand.u32 %v1129, 4294901760
    %1131 = vmatpush1.msra.mxu0 %v1130
    %1132 = vmatprep.subr.mxu0 0.0
    %v1133 = vand.u32 %v615, 4294901760
    %v1134 = vsub.f32 %v615, %v1133
    %v1135 = vand.u32 %v1134, 4294901760
    %1136 = vmatpush1.msra.mxu0 %v1135
    %1137 = vmatprep.subr.mxu0 0.0
    %v1138 = vand.u32 %v616, 4294901760
    %v1139 = vsub.f32 %v616, %v1138
    %v1140 = vand.u32 %v1139, 4294901760
    %1141 = vmatpush1.msra.mxu0 %v1140
    %1142 = vmatprep.subr.mxu0 0.0
    %v1143 = vand.u32 %v617, 4294901760
    %v1144 = vsub.f32 %v617, %v1143
    %v1145 = vand.u32 %v1144, 4294901760
    %1146 = vmatpush1.msra.mxu0 %v1145
    %1147 = vmatprep.subr.mxu0 0.0
    %v1148 = vand.u32 %v618, 4294901760
    %v1149 = vsub.f32 %v618, %v1148
    %v1150 = vand.u32 %v1149, 4294901760
    %1151 = vmatpush1.msra.mxu0 %v1150
    %1152 = vmatprep.subr.mxu0 0.0
    %v1153 = vand.u32 %v619, 4294901760
    %v1154 = vsub.f32 %v619, %v1153
    %v1155 = vand.u32 %v1154, 4294901760
    %1156 = vmatpush1.msra.mxu0 %v1155
    %1157 = vmatprep.subr.mxu0 0.0
    %v1158 = vand.u32 %v620, 4294901760
    %v1159 = vsub.f32 %v620, %v1158
    %v1160 = vand.u32 %v1159, 4294901760
    %1161 = vmatpush1.msra.mxu0 %v1160
    %1162 = vmatprep.subr.mxu0 0.0
    %v1163 = vand.u32 %v621, 4294901760
    %v1164 = vsub.f32 %v621, %v1163
    %v1165 = vand.u32 %v1164, 4294901760
    %1166 = vmatpush1.msra.mxu0 %v1165
    %1167 = vmatprep.subr.mxu0 0.0
    %v1168 = vand.u32 %v622, 4294901760
    %v1169 = vsub.f32 %v622, %v1168
    %v1170 = vand.u32 %v1169, 4294901760
    %1171 = vmatpush1.msra.mxu0 %v1170
    %1172 = vmatprep.subr.mxu0 0.0
    %v1173 = vand.u32 %v623, 4294901760
    %v1174 = vsub.f32 %v623, %v1173
    %v1175 = vand.u32 %v1174, 4294901760
    %1176 = vmatpush1.msra.mxu0 %v1175
    %1177 = vmatprep.subr.mxu0 0.0
    %1178 = vmatpush1.msra.mxu0 0.0
    %1179 = vmatprep.subr.mxu0 0.0
    %1180 = vmatpush1.msra.mxu0 0.0
    %1181 = vmatprep.subr.mxu0 0.0
    %1182 = vmatpush1.msra.mxu0 0.0
    %1183 = vmatprep.subr.mxu0 0.0
    %1184 = vmatpush1.msra.mxu0 0.0
    %1185 = vmatprep.subr.mxu0 0.0
    %1186 = vmatpush1.msra.mxu0 0.0
    %1187 = vmatprep.subr.mxu0 0.0
    %1188 = vmatpush1.msra.mxu0 0.0
    %1189 = vmatprep.subr.mxu0 0.0
    %1190 = vmatpush1.msra.mxu0 0.0
    %1191 = vmatprep.subr.mxu0 0.0
    %1192 = vmatpush1.msra.mxu0 0.0
    %1193 = vmatprep.subr.mxu0 0.0
    %1194 = vmatpush1.msra.mxu0 0.0
    %1195 = vmatprep.subr.mxu0 0.0
    %1196 = vmatpush1.msra.mxu0 0.0
    %1197 = vmatprep.subr.mxu0 0.0
    %1198 = vmatpush1.msra.mxu0 0.0
    %1199 = vmatprep.subr.mxu0 0.0
    %1200 = vmatpush1.msra.mxu0 0.0
    %1201 = vmatprep.subr.mxu0 0.0
    %1202 = vmatpush1.msra.mxu0 0.0
    %1203 = vmatprep.subr.mxu0 0.0
    %1204 = vmatpush1.msra.mxu0 0.0
    %1205 = vmatprep.subr.mxu0 0.0
    %1206 = vmatpush1.msra.mxu0 0.0
    %1207 = vmatprep.subr.mxu0 0.0
    %1208 = vmatpush1.msra.mxu0 0.0
    %1209 = vmatprep.mubr.f32.mxu0 0.0
    %v1210 = vand.u32 %v606, 4294901760
    %1211 = vmatmul.mubr.f32.gmra.mrb[0].mxu0 %v1210
    %v1212 = vpop.f32.mrb[0].mxu0
    %v1213 = vadd.f32 %v1086, %v1212
    %v1214 = vpop.f32.mrb[0].mxu0
    %1215 = vmatprep.mubr.f32.mxu0 0.0
    %v1216 = vand.u32 %v607, 4294901760
    %1217 = vmatmul.mubr.f32.gmra.mrb[0].mxu0 %v1216
    %v1218 = vpop.f32.mrb[0].mxu0
    %v1219 = vadd.f32 %v1094, %v1218
    %v1220 = vpop.f32.mrb[0].mxu0
    %1221 = vdwg.mxu0
    %1222 = vmatprep.subr.mxu0 0.0
    %v1223 = vand.u32 %v608, 4294901760
    %1224 = vmatpush1.msra.mxu0 %v1223
    %1225 = vmatprep.subr.mxu0 0.0
    %v1226 = vand.u32 %v609, 4294901760
    %1227 = vmatpush1.msra.mxu0 %v1226
    %1228 = vmatprep.subr.mxu0 0.0
    %v1229 = vand.u32 %v610, 4294901760
    %1230 = vmatpush1.msra.mxu0 %v1229
    %1231 = vmatprep.subr.mxu0 0.0
    %v1232 = vand.u32 %v611, 4294901760
    %1233 = vmatpush1.msra.mxu0 %v1232
    %1234 = vmatprep.subr.mxu0 0.0
    %v1235 = vand.u32 %v612, 4294901760
    %1236 = vmatpush1.msra.mxu0 %v1235
    %1237 = vmatprep.subr.mxu0 0.0
    %v1238 = vand.u32 %v613, 4294901760
    %1239 = vmatpush1.msra.mxu0 %v1238
    %1240 = vmatprep.subr.mxu0 0.0
    %v1241 = vand.u32 %v614, 4294901760
    %1242 = vmatpush1.msra.mxu0 %v1241
    %1243 = vmatprep.subr.mxu0 0.0
    %v1244 = vand.u32 %v615, 4294901760
    %1245 = vmatpush1.msra.mxu0 %v1244
    %1246 = vmatprep.subr.mxu0 0.0
    %v1247 = vand.u32 %v616, 4294901760
    %1248 = vmatpush1.msra.mxu0 %v1247
    %1249 = vmatprep.subr.mxu0 0.0
    %v1250 = vand.u32 %v617, 4294901760
    %1251 = vmatpush1.msra.mxu0 %v1250
    %1252 = vmatprep.subr.mxu0 0.0
    %v1253 = vand.u32 %v618, 4294901760
    %1254 = vmatpush1.msra.mxu0 %v1253
    %1255 = vmatprep.subr.mxu0 0.0
    %v1256 = vand.u32 %v619, 4294901760
    %1257 = vmatpush1.msra.mxu0 %v1256
    %1258 = vmatprep.subr.mxu0 0.0
    %v1259 = vand.u32 %v620, 4294901760
    %1260 = vmatpush1.msra.mxu0 %v1259
    %1261 = vmatprep.subr.mxu0 0.0
    %v1262 = vand.u32 %v621, 4294901760
    %1263 = vmatpush1.msra.mxu0 %v1262
    %1264 = vmatprep.subr.mxu0 0.0
    %v1265 = vand.u32 %v622, 4294901760
    %1266 = vmatpush1.msra.mxu0 %v1265
    %1267 = vmatprep.subr.mxu0 0.0
    %v1268 = vand.u32 %v623, 4294901760
    %1269 = vmatpush1.msra.mxu0 %v1268
    %1270 = vmatprep.subr.mxu0 0.0
    %1271 = vmatpush1.msra.mxu0 0.0
    %1272 = vmatprep.subr.mxu0 0.0
    %1273 = vmatpush1.msra.mxu0 0.0
    %1274 = vmatprep.subr.mxu0 0.0
    %1275 = vmatpush1.msra.mxu0 0.0
    %1276 = vmatprep.subr.mxu0 0.0
    %1277 = vmatpush1.msra.mxu0 0.0
    %1278 = vmatprep.subr.mxu0 0.0
    %1279 = vmatpush1.msra.mxu0 0.0
    %1280 = vmatprep.subr.mxu0 0.0
    %1281 = vmatpush1.msra.mxu0 0.0
    %1282 = vmatprep.subr.mxu0 0.0
    %1283 = vmatpush1.msra.mxu0 0.0
    %1284 = vmatprep.subr.mxu0 0.0
    %1285 = vmatpush1.msra.mxu0 0.0
    %1286 = vmatprep.subr.mxu0 0.0
    %1287 = vmatpush1.msra.mxu0 0.0
    %1288 = vmatprep.subr.mxu0 0.0
    %1289 = vmatpush1.msra.mxu0 0.0
    %1290 = vmatprep.subr.mxu0 0.0
    %1291 = vmatpush1.msra.mxu0 0.0
    %1292 = vmatprep.subr.mxu0 0.0
    %1293 = vmatpush1.msra.mxu0 0.0
    %1294 = vmatprep.subr.mxu0 0.0
    %1295 = vmatpush1.msra.mxu0 0.0
    %1296 = vmatprep.subr.mxu0 0.0
    %1297 = vmatpush1.msra.mxu0 0.0
    %1298 = vmatprep.subr.mxu0 0.0
    %1299 = vmatpush1.msra.mxu0 0.0
    %1300 = vmatprep.subr.mxu0 0.0
    %1301 = vmatpush1.msra.mxu0 0.0
    %1302 = vmatprep.mubr.f32.mxu0 0.0
    %v1303 = vand.u32 %v606, 4294901760
    %1304 = vmatmul.mubr.f32.gmra.mrb[0].mxu0 %v1303
    %v1305 = vpop.f32.mrb[0].mxu0
    %v1306 = vadd.f32 %v1213, %v1305
    %v1307 = vpop.f32.mrb[0].mxu0
    %1308 = vmatprep.mubr.f32.mxu0 0.0
    %v1309 = vand.u32 %v607, 4294901760
    %1310 = vmatmul.mubr.f32.gmra.mrb[0].mxu0 %v1309
    %v1311 = vpop.f32.mrb[0].mxu0
    %v1312 = vadd.f32 %v1219, %v1311
    %v1313 = vpop.f32.mrb[0].mxu0
    %1314 = vdwg.mxu0
    %v1315 = vmax.f32 %v1306, 0.0
    %v1316 = vmax.f32 %v1312, 0.0
    %v1317 = vld [vmem:[%s5] sm:$0xff]
    %v1318 = vld [vmem:[%s5 + $0x8] sm:$0xff]
    %v1319 = vld [vmem:[%s5 + $0x10] sm:$0xff]
    %v1320 = vld [vmem:[%s5 + $0x18] sm:$0xff]
    %v1321 = vld [vmem:[%s5 + $0x20] sm:$0xff]
    %v1322 = vld [vmem:[%s5 + $0x28] sm:$0xff]
    %v1323 = vld [vmem:[%s5 + $0x30] sm:$0xff]
    %v1324 = vld [vmem:[%s5 + $0x38] sm:$0xff]
    %v1325 = vld [vmem:[%s5 + $0x40] sm:$0xff]
    %v1326 = vld [vmem:[%s5 + $0x48] sm:$0xff]
    %v1327 = vld [vmem:[%s5 + $0x50] sm:$0xff]
    %v1328 = vld [vmem:[%s5 + $0x58] sm:$0xff]
    %v1329 = vld [vmem:[%s5 + $0x60] sm:$0xff]
    %v1330 = vld [vmem:[%s5 + $0x68] sm:$0xff]
    %v1331 = vld [vmem:[%s5 + $0x70] sm:$0xff]
    %v1332 = vld [vmem:[%s5 + $0x78] sm:$0xff]
    %v1333 = vld [vmem:[%s6] sm:$0x1]
    %v1335 = vlaneseq
    %v1336 = vshrl.u32 %v1335, 7
    %v1337 = vsub.s32 0, %v1336
    %v1338 = vrot.slane %v1333, %v1337
    %1340 = vmatprep.subr.mxu0 0.0
    %v1341 = vand.u32 %v1317, 4294901760
    %1342 = vmatpush1.msra.mxu0 %v1341
    %1343 = vmatprep.subr.mxu0 0.0
    %v1344 = vand.u32 %v1318, 4294901760
    %1345 = vmatpush1.msra.mxu0 %v1344
    %1346 = vmatprep.subr.mxu0 0.0
    %v1347 = vand.u32 %v1319, 4294901760
    %1348 = vmatpush1.msra.mxu0 %v1347
    %1349 = vmatprep.subr.mxu0 0.0
    %v1350 = vand.u32 %v1320, 4294901760
    %1351 = vmatpush1.msra.mxu0 %v1350
    %1352 = vmatprep.subr.mxu0 0.0
    %v1353 = vand.u32 %v1321, 4294901760
    %1354 = vmatpush1.msra.mxu0 %v1353
    %1355 = vmatprep.subr.mxu0 0.0
    %v1356 = vand.u32 %v1322, 4294901760
    %1357 = vmatpush1.msra.mxu0 %v1356
    %1358 = vmatprep.subr.mxu0 0.0
    %v1359 = vand.u32 %v1323, 4294901760
    %1360 = vmatpush1.msra.mxu0 %v1359
    %1361 = vmatprep.subr.mxu0 0.0
    %v1362 = vand.u32 %v1324, 4294901760
    %1363 = vmatpush1.msra.mxu0 %v1362
    %1364 = vmatprep.subr.mxu0 0.0
    %v1365 = vand.u32 %v1325, 4294901760
    %1366 = vmatpush1.msra.mxu0 %v1365
    %1367 = vmatprep.subr.mxu0 0.0
    %v1368 = vand.u32 %v1326, 4294901760
    %1369 = vmatpush1.msra.mxu0 %v1368
    %1370 = vmatprep.subr.mxu0 0.0
    %v1371 = vand.u32 %v1327, 4294901760
    %1372 = vmatpush1.msra.mxu0 %v1371
    %1373 = vmatprep.subr.mxu0 0.0
    %v1374 = vand.u32 %v1328, 4294901760
    %1375 = vmatpush1.msra.mxu0 %v1374
    %1376 = vmatprep.subr.mxu0 0.0
    %v1377 = vand.u32 %v1329, 4294901760
    %1378 = vmatpush1.msra.mxu0 %v1377
    %1379 = vmatprep.subr.mxu0 0.0
    %v1380 = vand.u32 %v1330, 4294901760
    %1381 = vmatpush1.msra.mxu0 %v1380
    %1382 = vmatprep.subr.mxu0 0.0
    %v1383 = vand.u32 %v1331, 4294901760
    %1384 = vmatpush1.msra.mxu0 %v1383
    %1385 = vmatprep.subr.mxu0 0.0
    %v1386 = vand.u32 %v1332, 4294901760
    %1387 = vmatpush1.msra.mxu0 %v1386
    %1388 = vmatprep.subr.mxu0 0.0
    %1389 = vmatpush1.msra.mxu0 0.0
    %1390 = vmatprep.subr.mxu0 0.0
    %1391 = vmatpush1.msra.mxu0 0.0
    %1392 = vmatprep.subr.mxu0 0.0
    %1393 = vmatpush1.msra.mxu0 0.0
    %1394 = vmatprep.subr.mxu0 0.0
    %1395 = vmatpush1.msra.mxu0 0.0
    %1396 = vmatprep.subr.mxu0 0.0
    %1397 = vmatpush1.msra.mxu0 0.0
    %1398 = vmatprep.subr.mxu0 0.0
    %1399 = vmatpush1.msra.mxu0 0.0
    %1400 = vmatprep.subr.mxu0 0.0
    %1401 = vmatpush1.msra.mxu0 0.0
    %1402 = vmatprep.subr.mxu0 0.0
    %1403 = vmatpush1.msra.mxu0 0.0
    %1404 = vmatprep.subr.mxu0 0.0
    %1405 = vmatpush1.msra.mxu0 0.0
    %1406 = vmatprep.subr.mxu0 0.0
    %1407 = vmatpush1.msra.mxu0 0.0
    %1408 = vmatprep.subr.mxu0 0.0
    %1409 = vmatpush1.msra.mxu0 0.0
    %1410 = vmatprep.subr.mxu0 0.0
    %1411 = vmatpush1.msra.mxu0 0.0
    %1412 = vmatprep.subr.mxu0 0.0
    %1413 = vmatpush1.msra.mxu0 0.0
    %1414 = vmatprep.subr.mxu0 0.0
    %1415 = vmatpush1.msra.mxu0 0.0
    %1416 = vmatprep.subr.mxu0 0.0
    %1417 = vmatpush1.msra.mxu0 0.0
    %1418 = vmatprep.subr.mxu0 0.0
    %1419 = vmatpush1.msra.mxu0 0.0
    %1420 = vmatprep.mubr.f32.mxu0 0.0
    %v1421 = vand.u32 %v1315, 4294901760
    %v1422 = vsub.f32 %v1315, %v1421
    %v1423 = vand.u32 %v1422, 4294901760
    %v1424 = vsub.f32 %v1422, %v1423
    %v1425 = vand.u32 %v1424, 4294901760
    %1426 = vmatmul.mubr.f32.gmra.mrb[0].mxu0 %v1425
    %v1427 = vpop.f32.mrb[0].mxu0
    %v1428 = vadd.f32 %v1338, %v1427
    %v1429 = vpop.f32.mrb[0].mxu0
    %1430 = vmatprep.mubr.f32.mxu0 0.0
    %v1431 = vand.u32 %v1316, 4294901760
    %v1432 = vsub.f32 %v1316, %v1431
    %v1433 = vand.u32 %v1432, 4294901760
    %v1434 = vsub.f32 %v1432, %v1433
    %v1435 = vand.u32 %v1434, 4294901760
    %1436 = vmatmul.mubr.f32.gmra.mrb[0].mxu0 %v1435
    %v1437 = vpop.f32.mrb[0].mxu0
    %v1438 = vadd.f32 %v1338, %v1437
    %v1439 = vpop.f32.mrb[0].mxu0
    %1440 = vdwg.mxu0
    %1441 = vmatprep.subr.mxu0 0.0
    %v1442 = vand.u32 %v1317, 4294901760
    %v1443 = vsub.f32 %v1317, %v1442
    %v1444 = vand.u32 %v1443, 4294901760
    %v1445 = vsub.f32 %v1443, %v1444
    %v1446 = vand.u32 %v1445, 4294901760
    %1447 = vmatpush1.msra.mxu0 %v1446
    %1448 = vmatprep.subr.mxu0 0.0
    %v1449 = vand.u32 %v1318, 4294901760
    %v1450 = vsub.f32 %v1318, %v1449
    %v1451 = vand.u32 %v1450, 4294901760
    %v1452 = vsub.f32 %v1450, %v1451
    %v1453 = vand.u32 %v1452, 4294901760
    %1454 = vmatpush1.msra.mxu0 %v1453
    %1455 = vmatprep.subr.mxu0 0.0
    %v1456 = vand.u32 %v1319, 4294901760
    %v1457 = vsub.f32 %v1319, %v1456
    %v1458 = vand.u32 %v1457, 4294901760
    %v1459 = vsub.f32 %v1457, %v1458
    %v1460 = vand.u32 %v1459, 4294901760
    %1461 = vmatpush1.msra.mxu0 %v1460
    %1462 = vmatprep.subr.mxu0 0.0
    %v1463 = vand.u32 %v1320, 4294901760
    %v1464 = vsub.f32 %v1320, %v1463
    %v1465 = vand.u32 %v1464, 4294901760
    %v1466 = vsub.f32 %v1464, %v1465
    %v1467 = vand.u32 %v1466, 4294901760
    %1468 = vmatpush1.msra.mxu0 %v1467
    %1469 = vmatprep.subr.mxu0 0.0
    %v1470 = vand.u32 %v1321, 4294901760
    %v1471 = vsub.f32 %v1321, %v1470
    %v1472 = vand.u32 %v1471, 4294901760
    %v1473 = vsub.f32 %v1471, %v1472
    %v1474 = vand.u32 %v1473, 4294901760
    %1475 = vmatpush1.msra.mxu0 %v1474
    %1476 = vmatprep.subr.mxu0 0.0
    %v1477 = vand.u32 %v1322, 4294901760
    %v1478 = vsub.f32 %v1322, %v1477
    %v1479 = vand.u32 %v1478, 4294901760
    %v1480 = vsub.f32 %v1478, %v1479
    %v1481 = vand.u32 %v1480, 4294901760
    %1482 = vmatpush1.msra.mxu0 %v1481
    %1483 = vmatprep.subr.mxu0 0.0
    %v1484 = vand.u32 %v1323, 4294901760
    %v1485 = vsub.f32 %v1323, %v1484
    %v1486 = vand.u32 %v1485, 4294901760
    %v1487 = vsub.f32 %v1485, %v1486
    %v1488 = vand.u32 %v1487, 4294901760
    %1489 = vmatpush1.msra.mxu0 %v1488
    %1490 = vmatprep.subr.mxu0 0.0
    %v1491 = vand.u32 %v1324, 4294901760
    %v1492 = vsub.f32 %v1324, %v1491
    %v1493 = vand.u32 %v1492, 4294901760
    %v1494 = vsub.f32 %v1492, %v1493
    %v1495 = vand.u32 %v1494, 4294901760
    %1496 = vmatpush1.msra.mxu0 %v1495
    %1497 = vmatprep.subr.mxu0 0.0
    %v1498 = vand.u32 %v1325, 4294901760
    %v1499 = vsub.f32 %v1325, %v1498
    %v1500 = vand.u32 %v1499, 4294901760
    %v1501 = vsub.f32 %v1499, %v1500
    %v1502 = vand.u32 %v1501, 4294901760
    %1503 = vmatpush1.msra.mxu0 %v1502
    %1504 = vmatprep.subr.mxu0 0.0
    %v1505 = vand.u32 %v1326, 4294901760
    %v1506 = vsub.f32 %v1326, %v1505
    %v1507 = vand.u32 %v1506, 4294901760
    %v1508 = vsub.f32 %v1506, %v1507
    %v1509 = vand.u32 %v1508, 4294901760
    %1510 = vmatpush1.msra.mxu0 %v1509
    %1511 = vmatprep.subr.mxu0 0.0
    %v1512 = vand.u32 %v1327, 4294901760
    %v1513 = vsub.f32 %v1327, %v1512
    %v1514 = vand.u32 %v1513, 4294901760
    %v1515 = vsub.f32 %v1513, %v1514
    %v1516 = vand.u32 %v1515, 4294901760
    %1517 = vmatpush1.msra.mxu0 %v1516
    %1518 = vmatprep.subr.mxu0 0.0
    %v1519 = vand.u32 %v1328, 4294901760
    %v1520 = vsub.f32 %v1328, %v1519
    %v1521 = vand.u32 %v1520, 4294901760
    %v1522 = vsub.f32 %v1520, %v1521
    %v1523 = vand.u32 %v1522, 4294901760
    %1524 = vmatpush1.msra.mxu0 %v1523
    %1525 = vmatprep.subr.mxu0 0.0
    %v1526 = vand.u32 %v1329, 4294901760
    %v1527 = vsub.f32 %v1329, %v1526
    %v1528 = vand.u32 %v1527, 4294901760
    %v1529 = vsub.f32 %v1527, %v1528
    %v1530 = vand.u32 %v1529, 4294901760
    %1531 = vmatpush1.msra.mxu0 %v1530
    %1532 = vmatprep.subr.mxu0 0.0
    %v1533 = vand.u32 %v1330, 4294901760
    %v1534 = vsub.f32 %v1330, %v1533
    %v1535 = vand.u32 %v1534, 4294901760
    %v1536 = vsub.f32 %v1534, %v1535
    %v1537 = vand.u32 %v1536, 4294901760
    %1538 = vmatpush1.msra.mxu0 %v1537
    %1539 = vmatprep.subr.mxu0 0.0
    %v1540 = vand.u32 %v1331, 4294901760
    %v1541 = vsub.f32 %v1331, %v1540
    %v1542 = vand.u32 %v1541, 4294901760
    %v1543 = vsub.f32 %v1541, %v1542
    %v1544 = vand.u32 %v1543, 4294901760
    %1545 = vmatpush1.msra.mxu0 %v1544
    %1546 = vmatprep.subr.mxu0 0.0
    %v1547 = vand.u32 %v1332, 4294901760
    %v1548 = vsub.f32 %v1332, %v1547
    %v1549 = vand.u32 %v1548, 4294901760
    %v1550 = vsub.f32 %v1548, %v1549
    %v1551 = vand.u32 %v1550, 4294901760
    %1552 = vmatpush1.msra.mxu0 %v1551
    %1553 = vmatprep.subr.mxu0 0.0
    %1554 = vmatpush1.msra.mxu0 0.0
    %1555 = vmatprep.subr.mxu0 0.0
    %1556 = vmatpush1.msra.mxu0 0.0
    %1557 = vmatprep.subr.mxu0 0.0
    %1558 = vmatpush1.msra.mxu0 0.0
    %1559 = vmatprep.subr.mxu0 0.0
    %1560 = vmatpush1.msra.mxu0 0.0
    %1561 = vmatprep.subr.mxu0 0.0
    %1562 = vmatpush1.msra.mxu0 0.0
    %1563 = vmatprep.subr.mxu0 0.0
    %1564 = vmatpush1.msra.mxu0 0.0
    %1565 = vmatprep.subr.mxu0 0.0
    %1566 = vmatpush1.msra.mxu0 0.0
    %1567 = vmatprep.subr.mxu0 0.0
    %1568 = vmatpush1.msra.mxu0 0.0
    %1569 = vmatprep.subr.mxu0 0.0
    %1570 = vmatpush1.msra.mxu0 0.0
    %1571 = vmatprep.subr.mxu0 0.0
    %1572 = vmatpush1.msra.mxu0 0.0
    %1573 = vmatprep.subr.mxu0 0.0
    %1574 = vmatpush1.msra.mxu0 0.0
    %1575 = vmatprep.subr.mxu0 0.0
    %1576 = vmatpush1.msra.mxu0 0.0
    %1577 = vmatprep.subr.mxu0 0.0
    %1578 = vmatpush1.msra.mxu0 0.0
    %1579 = vmatprep.subr.mxu0 0.0
    %1580 = vmatpush1.msra.mxu0 0.0
    %1581 = vmatprep.subr.mxu0 0.0
    %1582 = vmatpush1.msra.mxu0 0.0
    %1583 = vmatprep.subr.mxu0 0.0
    %1584 = vmatpush1.msra.mxu0 0.0
    %1585 = vmatprep.mubr.f32.mxu0 0.0
    %v1586 = vand.u32 %v1315, 4294901760
    %1587 = vmatmul.mubr.f32.gmra.mrb[0].mxu0 %v1586
    %v1588 = vpop.f32.mrb[0].mxu0
    %v1589 = vadd.f32 %v1428, %v1588
    %v1590 = vpop.f32.mrb[0].mxu0
    %1591 = vmatprep.mubr.f32.mxu0 0.0
    %v1592 = vand.u32 %v1316, 4294901760
    %1593 = vmatmul.mubr.f32.gmra.mrb[0].mxu0 %v1592
    %v1594 = vpop.f32.mrb[0].mxu0
    %v1595 = vadd.f32 %v1438, %v1594
    %v1596 = vpop.f32.mrb[0].mxu0
    %1597 = vdwg.mxu0
    %1598 = vmatprep.subr.mxu0 0.0
    %v1599 = vand.u32 %v1317, 4294901760
    %v1600 = vsub.f32 %v1317, %v1599
    %1601 = vmatpush1.msra.mxu0 %v1600
    %1602 = vmatprep.subr.mxu0 0.0
    %v1603 = vand.u32 %v1318, 4294901760
    %v1604 = vsub.f32 %v1318, %v1603
    %1605 = vmatpush1.msra.mxu0 %v1604
    %1606 = vmatprep.subr.mxu0 0.0
    %v1607 = vand.u32 %v1319, 4294901760
    %v1608 = vsub.f32 %v1319, %v1607
    %1609 = vmatpush1.msra.mxu0 %v1608
    %1610 = vmatprep.subr.mxu0 0.0
    %v1611 = vand.u32 %v1320, 4294901760
    %v1612 = vsub.f32 %v1320, %v1611
    %1613 = vmatpush1.msra.mxu0 %v1612
    %1614 = vmatprep.subr.mxu0 0.0
    %v1615 = vand.u32 %v1321, 4294901760
    %v1616 = vsub.f32 %v1321, %v1615
    %1617 = vmatpush1.msra.mxu0 %v1616
    %1618 = vmatprep.subr.mxu0 0.0
    %v1619 = vand.u32 %v1322, 4294901760
    %v1620 = vsub.f32 %v1322, %v1619
    %1621 = vmatpush1.msra.mxu0 %v1620
    %1622 = vmatprep.subr.mxu0 0.0
    %v1623 = vand.u32 %v1323, 4294901760
    %v1624 = vsub.f32 %v1323, %v1623
    %1625 = vmatpush1.msra.mxu0 %v1624
    %1626 = vmatprep.subr.mxu0 0.0
    %v1627 = vand.u32 %v1324, 4294901760
    %v1628 = vsub.f32 %v1324, %v1627
    %1629 = vmatpush1.msra.mxu0 %v1628
    %1630 = vmatprep.subr.mxu0 0.0
    %v1631 = vand.u32 %v1325, 4294901760
    %v1632 = vsub.f32 %v1325, %v1631
    %1633 = vmatpush1.msra.mxu0 %v1632
    %1634 = vmatprep.subr.mxu0 0.0
    %v1635 = vand.u32 %v1326, 4294901760
    %v1636 = vsub.f32 %v1326, %v1635
    %1637 = vmatpush1.msra.mxu0 %v1636
    %1638 = vmatprep.subr.mxu0 0.0
    %v1639 = vand.u32 %v1327, 4294901760
    %v1640 = vsub.f32 %v1327, %v1639
    %1641 = vmatpush1.msra.mxu0 %v1640
    %1642 = vmatprep.subr.mxu0 0.0
    %v1643 = vand.u32 %v1328, 4294901760
    %v1644 = vsub.f32 %v1328, %v1643
    %1645 = vmatpush1.msra.mxu0 %v1644
    %1646 = vmatprep.subr.mxu0 0.0
    %v1647 = vand.u32 %v1329, 4294901760
    %v1648 = vsub.f32 %v1329, %v1647
    %1649 = vmatpush1.msra.mxu0 %v1648
    %1650 = vmatprep.subr.mxu0 0.0
    %v1651 = vand.u32 %v1330, 4294901760
    %v1652 = vsub.f32 %v1330, %v1651
    %1653 = vmatpush1.msra.mxu0 %v1652
    %1654 = vmatprep.subr.mxu0 0.0
    %v1655 = vand.u32 %v1331, 4294901760
    %v1656 = vsub.f32 %v1331, %v1655
    %1657 = vmatpush1.msra.mxu0 %v1656
    %1658 = vmatprep.subr.mxu0 0.0
    %v1659 = vand.u32 %v1332, 4294901760
    %v1660 = vsub.f32 %v1332, %v1659
    %1661 = vmatpush1.msra.mxu0 %v1660
    %1662 = vmatprep.subr.mxu0 0.0
    %1663 = vmatpush1.msra.mxu0 0.0
    %1664 = vmatprep.subr.mxu0 0.0
    %1665 = vmatpush1.msra.mxu0 0.0
    %1666 = vmatprep.subr.mxu0 0.0
    %1667 = vmatpush1.msra.mxu0 0.0
    %1668 = vmatprep.subr.mxu0 0.0
    %1669 = vmatpush1.msra.mxu0 0.0
    %1670 = vmatprep.subr.mxu0 0.0
    %1671 = vmatpush1.msra.mxu0 0.0
    %1672 = vmatprep.subr.mxu0 0.0
    %1673 = vmatpush1.msra.mxu0 0.0
    %1674 = vmatprep.subr.mxu0 0.0
    %1675 = vmatpush1.msra.mxu0 0.0
    %1676 = vmatprep.subr.mxu0 0.0
    %1677 = vmatpush1.msra.mxu0 0.0
    %1678 = vmatprep.subr.mxu0 0.0
    %1679 = vmatpush1.msra.mxu0 0.0
    %1680 = vmatprep.subr.mxu0 0.0
    %1681 = vmatpush1.msra.mxu0 0.0
    %1682 = vmatprep.subr.mxu0 0.0
    %1683 = vmatpush1.msra.mxu0 0.0
    %1684 = vmatprep.subr.mxu0 0.0
    %1685 = vmatpush1.msra.mxu0 0.0
    %1686 = vmatprep.subr.mxu0 0.0
    %1687 = vmatpush1.msra.mxu0 0.0
    %1688 = vmatprep.subr.mxu0 0.0
    %1689 = vmatpush1.msra.mxu0 0.0
    %1690 = vmatprep.subr.mxu0 0.0
    %1691 = vmatpush1.msra.mxu0 0.0
    %1692 = vmatprep.subr.mxu0 0.0
    %1693 = vmatpush1.msra.mxu0 0.0
    %1694 = vmatprep.mubr.f32.mxu0 0.0
    %v1695 = vand.u32 %v1315, 4294901760
    %v1696 = vsub.f32 %v1315, %v1695
    %1697 = vmatmul.mubr.f32.gmra.mrb[0].mxu0 %v1696
    %v1698 = vpop.f32.mrb[0].mxu0
    %v1699 = vadd.f32 %v1589, %v1698
    %v1700 = vpop.f32.mrb[0].mxu0
    %1701 = vmatprep.mubr.f32.mxu0 0.0
    %v1702 = vand.u32 %v1316, 4294901760
    %v1703 = vsub.f32 %v1316, %v1702
    %1704 = vmatmul.mubr.f32.gmra.mrb[0].mxu0 %v1703
    %v1705 = vpop.f32.mrb[0].mxu0
    %v1706 = vadd.f32 %v1595, %v1705
    %v1707 = vpop.f32.mrb[0].mxu0
    %1708 = vdwg.mxu0
    %1709 = vmatprep.subr.mxu0 0.0
    %v1710 = vand.u32 %v1317, 4294901760
    %1711 = vmatpush1.msra.mxu0 %v1710
    %1712 = vmatprep.subr.mxu0 0.0
    %v1713 = vand.u32 %v1318, 4294901760
    %1714 = vmatpush1.msra.mxu0 %v1713
    %1715 = vmatprep.subr.mxu0 0.0
    %v1716 = vand.u32 %v1319, 4294901760
    %1717 = vmatpush1.msra.mxu0 %v1716
    %1718 = vmatprep.subr.mxu0 0.0
    %v1719 = vand.u32 %v1320, 4294901760
    %1720 = vmatpush1.msra.mxu0 %v1719
    %1721 = vmatprep.subr.mxu0 0.0
    %v1722 = vand.u32 %v1321, 4294901760
    %1723 = vmatpush1.msra.mxu0 %v1722
    %1724 = vmatprep.subr.mxu0 0.0
    %v1725 = vand.u32 %v1322, 4294901760
    %1726 = vmatpush1.msra.mxu0 %v1725
    %1727 = vmatprep.subr.mxu0 0.0
    %v1728 = vand.u32 %v1323, 4294901760
    %1729 = vmatpush1.msra.mxu0 %v1728
    %1730 = vmatprep.subr.mxu0 0.0
    %v1731 = vand.u32 %v1324, 4294901760
    %1732 = vmatpush1.msra.mxu0 %v1731
    %1733 = vmatprep.subr.mxu0 0.0
    %v1734 = vand.u32 %v1325, 4294901760
    %1735 = vmatpush1.msra.mxu0 %v1734
    %1736 = vmatprep.subr.mxu0 0.0
    %v1737 = vand.u32 %v1326, 4294901760
    %1738 = vmatpush1.msra.mxu0 %v1737
    %1739 = vmatprep.subr.mxu0 0.0
    %v1740 = vand.u32 %v1327, 4294901760
    %1741 = vmatpush1.msra.mxu0 %v1740
    %1742 = vmatprep.subr.mxu0 0.0
    %v1743 = vand.u32 %v1328, 4294901760
    %1744 = vmatpush1.msra.mxu0 %v1743
    %1745 = vmatprep.subr.mxu0 0.0
    %v1746 = vand.u32 %v1329, 4294901760
    %1747 = vmatpush1.msra.mxu0 %v1746
    %1748 = vmatprep.subr.mxu0 0.0
    %v1749 = vand.u32 %v1330, 4294901760
    %1750 = vmatpush1.msra.mxu0 %v1749
    %1751 = vmatprep.subr.mxu0 0.0
    %v1752 = vand.u32 %v1331, 4294901760
    %1753 = vmatpush1.msra.mxu0 %v1752
    %1754 = vmatprep.subr.mxu0 0.0
    %v1755 = vand.u32 %v1332, 4294901760
    %1756 = vmatpush1.msra.mxu0 %v1755
    %1757 = vmatprep.subr.mxu0 0.0
    %1758 = vmatpush1.msra.mxu0 0.0
    %1759 = vmatprep.subr.mxu0 0.0
    %1760 = vmatpush1.msra.mxu0 0.0
    %1761 = vmatprep.subr.mxu0 0.0
    %1762 = vmatpush1.msra.mxu0 0.0
    %1763 = vmatprep.subr.mxu0 0.0
    %1764 = vmatpush1.msra.mxu0 0.0
    %1765 = vmatprep.subr.mxu0 0.0
    %1766 = vmatpush1.msra.mxu0 0.0
    %1767 = vmatprep.subr.mxu0 0.0
    %1768 = vmatpush1.msra.mxu0 0.0
    %1769 = vmatprep.subr.mxu0 0.0
    %1770 = vmatpush1.msra.mxu0 0.0
    %1771 = vmatprep.subr.mxu0 0.0
    %1772 = vmatpush1.msra.mxu0 0.0
    %1773 = vmatprep.subr.mxu0 0.0
    %1774 = vmatpush1.msra.mxu0 0.0
    %1775 = vmatprep.subr.mxu0 0.0
    %1776 = vmatpush1.msra.mxu0 0.0
    %1777 = vmatprep.subr.mxu0 0.0
    %1778 = vmatpush1.msra.mxu0 0.0
    %1779 = vmatprep.subr.mxu0 0.0
    %1780 = vmatpush1.msra.mxu0 0.0
    %1781 = vmatprep.subr.mxu0 0.0
    %1782 = vmatpush1.msra.mxu0 0.0
    %1783 = vmatprep.subr.mxu0 0.0
    %1784 = vmatpush1.msra.mxu0 0.0
    %1785 = vmatprep.subr.mxu0 0.0
    %1786 = vmatpush1.msra.mxu0 0.0
    %1787 = vmatprep.subr.mxu0 0.0
    %1788 = vmatpush1.msra.mxu0 0.0
    %1789 = vmatprep.mubr.f32.mxu0 0.0
    %v1790 = vand.u32 %v1315, 4294901760
    %v1791 = vsub.f32 %v1315, %v1790
    %v1792 = vand.u32 %v1791, 4294901760
    %1793 = vmatmul.mubr.f32.gmra.mrb[0].mxu0 %v1792
    %v1794 = vpop.f32.mrb[0].mxu0
    %v1795 = vadd.f32 %v1699, %v1794
    %v1796 = vpop.f32.mrb[0].mxu0
    %1797 = vmatprep.mubr.f32.mxu0 0.0
    %v1798 = vand.u32 %v1316, 4294901760
    %v1799 = vsub.f32 %v1316, %v1798
    %v1800 = vand.u32 %v1799, 4294901760
    %1801 = vmatmul.mubr.f32.gmra.mrb[0].mxu0 %v1800
    %v1802 = vpop.f32.mrb[0].mxu0
    %v1803 = vadd.f32 %v1706, %v1802
    %v1804 = vpop.f32.mrb[0].mxu0
    %1805 = vdwg.mxu0
    %1806 = vmatprep.subr.mxu0 0.0
    %v1807 = vand.u32 %v1317, 4294901760
    %v1808 = vsub.f32 %v1317, %v1807
    %v1809 = vand.u32 %v1808, 4294901760
    %1810 = vmatpush1.msra.mxu0 %v1809
    %1811 = vmatprep.subr.mxu0 0.0
    %v1812 = vand.u32 %v1318, 4294901760
    %v1813 = vsub.f32 %v1318, %v1812
    %v1814 = vand.u32 %v1813, 4294901760
    %1815 = vmatpush1.msra.mxu0 %v1814
    %1816 = vmatprep.subr.mxu0 0.0
    %v1817 = vand.u32 %v1319, 4294901760
    %v1818 = vsub.f32 %v1319, %v1817
    %v1819 = vand.u32 %v1818, 4294901760
    %1820 = vmatpush1.msra.mxu0 %v1819
    %1821 = vmatprep.subr.mxu0 0.0
    %v1822 = vand.u32 %v1320, 4294901760
    %v1823 = vsub.f32 %v1320, %v1822
    %v1824 = vand.u32 %v1823, 4294901760
    %1825 = vmatpush1.msra.mxu0 %v1824
    %1826 = vmatprep.subr.mxu0 0.0
    %v1827 = vand.u32 %v1321, 4294901760
    %v1828 = vsub.f32 %v1321, %v1827
    %v1829 = vand.u32 %v1828, 4294901760
    %1830 = vmatpush1.msra.mxu0 %v1829
    %1831 = vmatprep.subr.mxu0 0.0
    %v1832 = vand.u32 %v1322, 4294901760
    %v1833 = vsub.f32 %v1322, %v1832
    %v1834 = vand.u32 %v1833, 4294901760
    %1835 = vmatpush1.msra.mxu0 %v1834
    %1836 = vmatprep.subr.mxu0 0.0
    %v1837 = vand.u32 %v1323, 4294901760
    %v1838 = vsub.f32 %v1323, %v1837
    %v1839 = vand.u32 %v1838, 4294901760
    %1840 = vmatpush1.msra.mxu0 %v1839
    %1841 = vmatprep.subr.mxu0 0.0
    %v1842 = vand.u32 %v1324, 4294901760
    %v1843 = vsub.f32 %v1324, %v1842
    %v1844 = vand.u32 %v1843, 4294901760
    %1845 = vmatpush1.msra.mxu0 %v1844
    %1846 = vmatprep.subr.mxu0 0.0
    %v1847 = vand.u32 %v1325, 4294901760
    %v1848 = vsub.f32 %v1325, %v1847
    %v1849 = vand.u32 %v1848, 4294901760
    %1850 = vmatpush1.msra.mxu0 %v1849
    %1851 = vmatprep.subr.mxu0 0.0
    %v1852 = vand.u32 %v1326, 4294901760
    %v1853 = vsub.f32 %v1326, %v1852
    %v1854 = vand.u32 %v1853, 4294901760
    %1855 = vmatpush1.msra.mxu0 %v1854
    %1856 = vmatprep.subr.mxu0 0.0
    %v1857 = vand.u32 %v1327, 4294901760
    %v1858 = vsub.f32 %v1327, %v1857
    %v1859 = vand.u32 %v1858, 4294901760
    %1860 = vmatpush1.msra.mxu0 %v1859
    %1861 = vmatprep.subr.mxu0 0.0
    %v1862 = vand.u32 %v1328, 4294901760
    %v1863 = vsub.f32 %v1328, %v1862
    %v1864 = vand.u32 %v1863, 4294901760
    %1865 = vmatpush1.msra.mxu0 %v1864
    %1866 = vmatprep.subr.mxu0 0.0
    %v1867 = vand.u32 %v1329, 4294901760
    %v1868 = vsub.f32 %v1329, %v1867
    %v1869 = vand.u32 %v1868, 4294901760
    %1870 = vmatpush1.msra.mxu0 %v1869
    %1871 = vmatprep.subr.mxu0 0.0
    %v1872 = vand.u32 %v1330, 4294901760
    %v1873 = vsub.f32 %v1330, %v1872
    %v1874 = vand.u32 %v1873, 4294901760
    %1875 = vmatpush1.msra.mxu0 %v1874
    %1876 = vmatprep.subr.mxu0 0.0
    %v1877 = vand.u32 %v1331, 4294901760
    %v1878 = vsub.f32 %v1331, %v1877
    %v1879 = vand.u32 %v1878, 4294901760
    %1880 = vmatpush1.msra.mxu0 %v1879
    %1881 = vmatprep.subr.mxu0 0.0
    %v1882 = vand.u32 %v1332, 4294901760
    %v1883 = vsub.f32 %v1332, %v1882
    %v1884 = vand.u32 %v1883, 4294901760
    %1885 = vmatpush1.msra.mxu0 %v1884
    %1886 = vmatprep.subr.mxu0 0.0
    %1887 = vmatpush1.msra.mxu0 0.0
    %1888 = vmatprep.subr.mxu0 0.0
    %1889 = vmatpush1.msra.mxu0 0.0
    %1890 = vmatprep.subr.mxu0 0.0
    %1891 = vmatpush1.msra.mxu0 0.0
    %1892 = vmatprep.subr.mxu0 0.0
    %1893 = vmatpush1.msra.mxu0 0.0
    %1894 = vmatprep.subr.mxu0 0.0
    %1895 = vmatpush1.msra.mxu0 0.0
    %1896 = vmatprep.subr.mxu0 0.0
    %1897 = vmatpush1.msra.mxu0 0.0
    %1898 = vmatprep.subr.mxu0 0.0
    %1899 = vmatpush1.msra.mxu0 0.0
    %1900 = vmatprep.subr.mxu0 0.0
    %1901 = vmatpush1.msra.mxu0 0.0
    %1902 = vmatprep.subr.mxu0 0.0
    %1903 = vmatpush1.msra.mxu0 0.0
    %1904 = vmatprep.subr.mxu0 0.0
    %1905 = vmatpush1.msra.mxu0 0.0
    %1906 = vmatprep.subr.mxu0 0.0
    %1907 = vmatpush1.msra.mxu0 0.0
    %1908 = vmatprep.subr.mxu0 0.0
    %1909 = vmatpush1.msra.mxu0 0.0
    %1910 = vmatprep.subr.mxu0 0.0
    %1911 = vmatpush1.msra.mxu0 0.0
    %1912 = vmatprep.subr.mxu0 0.0
    %1913 = vmatpush1.msra.mxu0 0.0
    %1914 = vmatprep.subr.mxu0 0.0
    %1915 = vmatpush1.msra.mxu0 0.0
    %1916 = vmatprep.subr.mxu0 0.0
    %1917 = vmatpush1.msra.mxu0 0.0
    %1918 = vmatprep.mubr.f32.mxu0 0.0
    %v1919 = vand.u32 %v1315, 4294901760
    %1920 = vmatmul.mubr.f32.gmra.mrb[0].mxu0 %v1919
    %v1921 = vpop.f32.mrb[0].mxu0
    %v1922 = vadd.f32 %v1795, %v1921
    %v1923 = vpop.f32.mrb[0].mxu0
    %1924 = vmatprep.mubr.f32.mxu0 0.0
    %v1925 = vand.u32 %v1316, 4294901760
    %1926 = vmatmul.mubr.f32.gmra.mrb[0].mxu0 %v1925
    %v1927 = vpop.f32.mrb[0].mxu0
    %v1928 = vadd.f32 %v1803, %v1927
    %v1929 = vpop.f32.mrb[0].mxu0
    %1930 = vdwg.mxu0
    %1931 = vmatprep.subr.mxu0 0.0
    %v1932 = vand.u32 %v1317, 4294901760
    %1933 = vmatpush1.msra.mxu0 %v1932
    %1934 = vmatprep.subr.mxu0 0.0
    %v1935 = vand.u32 %v1318, 4294901760
    %1936 = vmatpush1.msra.mxu0 %v1935
    %1937 = vmatprep.subr.mxu0 0.0
    %v1938 = vand.u32 %v1319, 4294901760
    %1939 = vmatpush1.msra.mxu0 %v1938
    %1940 = vmatprep.subr.mxu0 0.0
    %v1941 = vand.u32 %v1320, 4294901760
    %1942 = vmatpush1.msra.mxu0 %v1941
    %1943 = vmatprep.subr.mxu0 0.0
    %v1944 = vand.u32 %v1321, 4294901760
    %1945 = vmatpush1.msra.mxu0 %v1944
    %1946 = vmatprep.subr.mxu0 0.0
    %v1947 = vand.u32 %v1322, 4294901760
    %1948 = vmatpush1.msra.mxu0 %v1947
    %1949 = vmatprep.subr.mxu0 0.0
    %v1950 = vand.u32 %v1323, 4294901760
    %1951 = vmatpush1.msra.mxu0 %v1950
    %1952 = vmatprep.subr.mxu0 0.0
    %v1953 = vand.u32 %v1324, 4294901760
    %1954 = vmatpush1.msra.mxu0 %v1953
    %1955 = vmatprep.subr.mxu0 0.0
    %v1956 = vand.u32 %v1325, 4294901760
    %1957 = vmatpush1.msra.mxu0 %v1956
    %1958 = vmatprep.subr.mxu0 0.0
    %v1959 = vand.u32 %v1326, 4294901760
    %1960 = vmatpush1.msra.mxu0 %v1959
    %1961 = vmatprep.subr.mxu0 0.0
    %v1962 = vand.u32 %v1327, 4294901760
    %1963 = vmatpush1.msra.mxu0 %v1962
    %1964 = vmatprep.subr.mxu0 0.0
    %v1965 = vand.u32 %v1328, 4294901760
    %1966 = vmatpush1.msra.mxu0 %v1965
    %1967 = vmatprep.subr.mxu0 0.0
    %v1968 = vand.u32 %v1329, 4294901760
    %1969 = vmatpush1.msra.mxu0 %v1968
    %1970 = vmatprep.subr.mxu0 0.0
    %v1971 = vand.u32 %v1330, 4294901760
    %1972 = vmatpush1.msra.mxu0 %v1971
    %1973 = vmatprep.subr.mxu0 0.0
    %v1974 = vand.u32 %v1331, 4294901760
    %1975 = vmatpush1.msra.mxu0 %v1974
    %1976 = vmatprep.subr.mxu0 0.0
    %v1977 = vand.u32 %v1332, 4294901760
    %1978 = vmatpush1.msra.mxu0 %v1977
    %1979 = vmatprep.subr.mxu0 0.0
    %1980 = vmatpush1.msra.mxu0 0.0
    %1981 = vmatprep.subr.mxu0 0.0
    %1982 = vmatpush1.msra.mxu0 0.0
    %1983 = vmatprep.subr.mxu0 0.0
    %1984 = vmatpush1.msra.mxu0 0.0
    %1985 = vmatprep.subr.mxu0 0.0
    %1986 = vmatpush1.msra.mxu0 0.0
    %1987 = vmatprep.subr.mxu0 0.0
    %1988 = vmatpush1.msra.mxu0 0.0
    %1989 = vmatprep.subr.mxu0 0.0
    %1990 = vmatpush1.msra.mxu0 0.0
    %1991 = vmatprep.subr.mxu0 0.0
    %1992 = vmatpush1.msra.mxu0 0.0
    %1993 = vmatprep.subr.mxu0 0.0
    %1994 = vmatpush1.msra.mxu0 0.0
    %1995 = vmatprep.subr.mxu0 0.0
    %1996 = vmatpush1.msra.mxu0 0.0
    %1997 = vmatprep.subr.mxu0 0.0
    %1998 = vmatpush1.msra.mxu0 0.0
    %1999 = vmatprep.subr.mxu0 0.0
    %2000 = vmatpush1.msra.mxu0 0.0
    %2001 = vmatprep.subr.mxu0 0.0
    %2002 = vmatpush1.msra.mxu0 0.0
    %2003 = vmatprep.subr.mxu0 0.0
    %2004 = vmatpush1.msra.mxu0 0.0
    %2005 = vmatprep.subr.mxu0 0.0
    %2006 = vmatpush1.msra.mxu0 0.0
    %2007 = vmatprep.subr.mxu0 0.0
    %2008 = vmatpush1.msra.mxu0 0.0
    %2009 = vmatprep.subr.mxu0 0.0
    %2010 = vmatpush1.msra.mxu0 0.0
    %2011 = vmatprep.mubr.f32.mxu0 0.0
    %v2012 = vand.u32 %v1315, 4294901760
    %2013 = vmatmul.mubr.f32.gmra.mrb[0].mxu0 %v2012
    %v2014 = vpop.f32.mrb[0].mxu0
    %v2015 = vadd.f32 %v1922, %v2014
    %v2016 = vpop.f32.mrb[0].mxu0
    %2017 = vmatprep.mubr.f32.mxu0 0.0
    %v2018 = vand.u32 %v1316, 4294901760
    %2019 = vmatmul.mubr.f32.gmra.mrb[0].mxu0 %v2018
    %v2020 = vpop.f32.mrb[0].mxu0
    %v2021 = vadd.f32 %v1928, %v2020
    %v2022 = vpop.f32.mrb[0].mxu0
    %2023 = vdwg.mxu0
    %vm2024 = vcmask 56320
    %2025 = vst.msk [vmem:[%s7] sm:$0xff] %vm2024, %v2015
    %2026 = vst.msk [vmem:[%s7 + $0x8] sm:$0xff] %vm2024, %v2021
    // Predicated region
    $region34: #{tpu_custom_call.1} parent=1 // pred_check
      _
    $region35: #{tpu_custom_call.1} parent=1 // pred_check_branch
      %2028 = sbr.rel (0) target = $region37
    $region36: #{tpu_custom_call.1} parent=1 // pred_region
      _
    $region37: #{tpu_custom_call.1} parent=1 // pred_fallthru
      _
    // Predicated region
    $region38: #{tpu_custom_call.1} parent=1 // pred_check
      _
    $region39: #{tpu_custom_call.1} parent=1 // pred_check_branch
      %2030 = sbr.rel (0) target = $region41
    $region40: #{tpu_custom_call.1} parent=1 // pred_region
      _
    $region41: #{tpu_custom_call.1} parent=1 // pred_fallthru
      _
    %2031 = vsyncpa [#allocation3], 1

</llo_original>
